<compile_context>
chip_gen: v7x
topology: tpu7x:2x2x1
jax: 0.10.0
libtpu: 0.0.40
codegen_flags: <defaults>
</compile_context>

<pallas_src>
import functools
import math

import jax
import jax.numpy as jnp
import numpy as np
from jax.experimental import pallas as pl
from jax.experimental.pallas import tpu as pltpu


def mha_kernel(q_ref, k_ref, v_ref,
               wq_ref, bq_ref, wk_ref, bk_ref, wv_ref, bv_ref,
               wp_ref, bp_ref, gamma_ref, beta_ref,
               no_ref, ro_ref, attn_ref,
               *, n_heads, d_k, d_v, eps):
    bb, S, d_model = q_ref.shape

    # (bb,S,d_model)->(bb*S,d_model) is layout-free when S is a multiple of 8
    # sublanes (true at the demo shapes); otherwise it is a small VMEM copy.
    q2 = q_ref[...].reshape(bb * S, d_model)          # f32, kept for residual
    k2 = k_ref[...].reshape(bb * S, d_model)
    v2 = v_ref[...].reshape(bb * S, d_model)

    # ---- fused Q/K/V projections: bf16 MXU operands, f32 accumulation ----
    # NOTE: 1/sqrt(d_k) is already folded into wq/bq by the wrapper; the
    # weight refs arrive pre-cast to bf16.
    qp = jnp.dot(q2.astype(jnp.bfloat16), wq_ref[...],
                 preferred_element_type=jnp.float32) + bq_ref[...]
    kp = jnp.dot(k2.astype(jnp.bfloat16), wk_ref[...],
                 preferred_element_type=jnp.float32) + bk_ref[...]
    vp = jnp.dot(v2.astype(jnp.bfloat16), wv_ref[...],
                 preferred_element_type=jnp.float32) + bv_ref[...]

    qh = qp.reshape(bb, S, n_heads * d_k).astype(jnp.bfloat16)
    kh = kp.reshape(bb, S, n_heads * d_k).astype(jnp.bfloat16)
    vh = vp.reshape(bb, S, n_heads * d_v).astype(jnp.bfloat16)

    wp_all = wp_ref[...]                               # (H*d_v, d_model) bf16
    out2 = jnp.zeros((bb * S, d_model), jnp.float32)   # output-proj accumulator

    for h in range(n_heads):  # static unroll, n_heads is small
        q_h = qh[:, :, h * d_k:(h + 1) * d_k]          # (bb, S, d_k) bf16
        k_h = kh[:, :, h * d_k:(h + 1) * d_k]
        v_h = vh[:, :, h * d_v:(h + 1) * d_v]

        # Batched scores, contracting d_k directly (no materialized transpose).
        # Softmax statistics stay in f32.
        s = jnp.einsum('bqd,bkd->bqk', q_h, k_h,
                       preferred_element_type=jnp.float32)     # (bb, S, S) f32
        m = jnp.max(s, axis=-1, keepdims=True)
        e = jnp.exp(s - m)
        denom = jnp.sum(e, axis=-1, keepdims=True)
        attn_h = e * pl.reciprocal(denom, approx=True)          # EUP slot

        # torch's isnan scrub of context/attn is unreachable with
        # attn_mask=None and finite inputs, so it is elided.

        ctx_h = jnp.einsum('bqk,bkd->bqd', attn_h.astype(jnp.bfloat16), v_h,
                           preferred_element_type=jnp.float32)  # (bb, S, d_v)

        # Accumulate the output projection per head (no lane-axis concat).
        out2 = out2 + jnp.dot(
            ctx_h.reshape(bb * S, d_v).astype(jnp.bfloat16),
            wp_all[h * d_v:(h + 1) * d_v, :],
            preferred_element_type=jnp.float32)

        # Stream this head's probabilities straight out in the final
        # (B, H, S, S) layout — no concat, no wrapper transpose.
        attn_ref[:, h, :, :] = attn_h

    # ---- output bias + residual + LayerNorm (all f32) ----
    out2 = out2 + bp_ref[...]
    ro2 = q2 + out2                                              # residual add

    mean = jnp.mean(ro2, axis=-1, keepdims=True)
    var = jnp.mean((ro2 - mean) ** 2, axis=-1, keepdims=True)
    inv = jax.lax.rsqrt(var + eps)                               # EUP slot
    no2 = (ro2 - mean) * inv * gamma_ref[...] + beta_ref[...]

    ro_ref[...] = ro2.reshape(bb, S, d_model)
    no_ref[...] = no2.reshape(bb, S, d_model)


def multi_head_attention(q, k, v, params, *, n_heads, d_k, d_v, block_b=None):
    B, S, d_model = q.shape
    (wq, bq, wk, bk, wv, bv, wp, bp, gamma, beta) = params

    # Batch tiling: guarantee >= 2 grid steps whenever B >= 2 so the "parallel"
    # batch axis can shard across v7x's two TensorCores; within that, pick the
    # largest divisor of B to amortize the ~0.35 us per-step pipeline overhead
    # (on 1-TC v5e/v6e the cost of the extra step is negligible at these sizes).
    if block_b is None:
        min_steps = 2 if B >= 2 else 1
        block_b = max(c for c in range(1, B + 1)
                      if B % c == 0 and B // c >= min_steps)
    assert B % block_b == 0
    grid = (B // block_b,)

    # Fold the 1/sqrt(d_k) attention scale into the Q projection (zero in-kernel
    # cost), then cast the matmul weights to bf16 for the MXU fast path.
    # Biases / gamma / beta stay f32 (added after the f32-accumulated dots).
    inv_scale = jnp.float32(1.0 / math.sqrt(d_k))
    wq_b = (wq * inv_scale).astype(jnp.bfloat16)
    bq_s = bq * inv_scale
    wk_b = wk.astype(jnp.bfloat16)
    wv_b = wv.astype(jnp.bfloat16)
    wp_b = wp.astype(jnp.bfloat16)

    kernel = functools.partial(
        mha_kernel, n_heads=n_heads, d_k=d_k, d_v=d_v, eps=1e-5)

    qkv_spec = pl.BlockSpec((block_b, S, d_model), lambda b: (b, 0, 0))

    def full2d(shape):
        return pl.BlockSpec(shape, lambda b: (0, 0))

    in_specs = [
        qkv_spec, qkv_spec, qkv_spec,                         # q, k, v
        full2d((d_model, n_heads * d_k)),                     # wq (pre-T, pre-scaled, bf16)
        full2d((1, n_heads * d_k)),                           # bq (pre-scaled, f32)
        full2d((d_model, n_heads * d_k)),                     # wk (bf16)
        full2d((1, n_heads * d_k)),                           # bk
        full2d((d_model, n_heads * d_v)),                     # wv (bf16)
        full2d((1, n_heads * d_v)),                           # bv
        full2d((n_heads * d_v, d_model)),                     # wp (pre-T, bf16)
        full2d((1, d_model)),                                 # bp
        full2d((1, d_model)),                                 # gamma
        full2d((1, d_model)),                                 # beta
    ]
    out_specs = [
        qkv_spec,                                             # no (layer-normed)
        qkv_spec,                                             # ro (residual + output)
        pl.BlockSpec((block_b, n_heads, S, S),
                     lambda b: (b, 0, 0, 0)),                 # attn, final layout
    ]
    out_shape = [
        jax.ShapeDtypeStruct((B, S, d_model), jnp.float32),
        jax.ShapeDtypeStruct((B, S, d_model), jnp.float32),
        jax.ShapeDtypeStruct((B, n_heads, S, S), jnp.float32),
    ]

    # Explicit scoped-VMEM budget from the per-step block footprint (defaults
    # are only 16/32 MiB); clamped to v7x's 64 MiB physical per-TC capacity.
    blk_io = 5 * block_b * S * d_model * 4               # q,k,v,no,ro blocks (f32)
    blk_attn = block_b * n_heads * S * S * 4             # attn block (f32)
    w_bytes = ((3 * d_model * n_heads * d_k + n_heads * d_v * d_model) * 2
               + (2 * n_heads * d_k + n_heads * d_v + 3 * d_model) * 4)
    vmem_needed = 2 * (blk_io + blk_attn + w_bytes) + (8 << 20)  # 2x double-buffer
    vmem_limit = int(min(max(vmem_needed, 32 << 20), 64 << 20))

    no, ro, attn = pl.pallas_call(
        kernel,
        grid=grid,
        in_specs=in_specs,
        out_specs=out_specs,
        out_shape=out_shape,
        compiler_params=pltpu.CompilerParams(
            dimension_semantics=("parallel",),       # independent batch tiles
            vmem_limit_bytes=vmem_limit),
    )(q, k, v, wq_b, bq_s, wk_b, bk, wv_b, bv, wp_b, bp, gamma, beta)

    # torch: if isnan(no).any() and not isnan(ro).any(): return (ro, attn)
    use_ro = jnp.logical_and(jnp.any(jnp.isnan(no)),
                             jnp.logical_not(jnp.any(jnp.isnan(ro))))
    out = jnp.where(use_ro, ro, no)
    return out, attn


def init_params(key, d_model, d_k, d_v, n_heads):
    """Deterministic synthetic parameters, pre-laid-out for the fused kernel."""
    ks = jax.random.split(key, 8)

    def unif(k, shape, fan_in):
        bound = 1.0 / math.sqrt(fan_in)
        return jax.random.uniform(k, shape, jnp.float32, -bound, bound)

    # torch nn.Linear weights: (out_features, in_features)
    wq = unif(ks[0], (n_heads * d_k, d_model), d_model)
    bq = unif(ks[1], (n_heads * d_k,), d_model)
    wk = unif(ks[2], (n_heads * d_k, d_model), d_model)
    bk = unif(ks[3], (n_heads * d_k,), d_model)
    wv = unif(ks[4], (n_heads * d_v, d_model), d_model)
    bv = unif(ks[5], (n_heads * d_v,), d_model)
    wp = unif(ks[6], (d_model, n_heads * d_v), n_heads * d_v)
    bp = unif(ks[7], (d_model,), n_heads * d_v)
    gamma = jnp.ones((d_model,), jnp.float32)
    beta = jnp.zeros((d_model,), jnp.float32)

    # Kernel layout: transposed so the kernel computes y = x @ W + b, with the
    # output-feature axis head-major (matches torch's .view(b, S, H, d) split).
    return (wq.T, bq.reshape(1, -1),
            wk.T, bk.reshape(1, -1),
            wv.T, bv.reshape(1, -1),
            wp.T, bp.reshape(1, -1),
            gamma.reshape(1, -1), beta.reshape(1, -1))


def reference(q, k, v, params, *, n_heads, d_k, d_v, eps=1e-5):
    """Pure-JAX f32 reference mirroring the torch module (dropout=None, mask=None)."""
    (wq, bq, wk, bk, wv, bv, wp, bp, gamma, beta) = params
    B, S, d_model = q.shape

    def proj(x, w, b, dh):
        y = x @ w + b                                   # (B, S, H*dh)
        return y.reshape(B, S, n_heads, dh).transpose(0, 2, 1, 3)

    qs = proj(q, wq, bq, d_k)
    ks_ = proj(k, wk, bk, d_k)
    vs = proj(v, wv, bv, d_v)
    scores = jnp.einsum('bhqd,bhkd->bhqk', qs, ks_) / math.sqrt(d_k)
    attn = jax.nn.softmax(scores, axis=-1)
    ctx = jnp.einsum('bhqk,bhkd->bhqd', attn, vs)
    ctx = ctx.transpose(0, 2, 1, 3).reshape(B, S, n_heads * d_v)
    out = ctx @ wp + bp
    ro = q + out
    mean = ro.mean(-1, keepdims=True)
    var = ((ro - mean) ** 2).mean(-1, keepdims=True)
    no = (ro - mean) / jnp.sqrt(var + eps) * gamma + beta
    return no, attn


if __name__ == "__main__":
    B, S, d_model = 2, 8, 32
    n_heads, d_k, d_v = 4, 8, 8

    key = jax.random.PRNGKey(0)
    k_q, k_k, k_v, k_p = jax.random.split(key, 4)
    q = jax.random.normal(k_q, (B, S, d_model), jnp.float32)
    k = jax.random.normal(k_k, (B, S, d_model), jnp.float32)
    v = jax.random.normal(k_v, (B, S, d_model), jnp.float32)

    params = init_params(k_p, d_model, d_k, d_v, n_heads)

    out, attn = multi_head_attention(q, k, v, params,
                                     n_heads=n_heads, d_k=d_k, d_v=d_v)
    jax.block_until_ready((out, attn))

    assert out.shape == (B, S, d_model)
    assert attn.shape == (B, n_heads, S, S)

    ref_out, ref_attn = reference(q, k, v, params,
                                  n_heads=n_heads, d_k=d_k, d_v=d_v)
    np.testing.assert_allclose(np.asarray(out), np.asarray(ref_out),
                               rtol=2e-2, atol=2e-2)
    np.testing.assert_allclose(np.asarray(attn), np.asarray(ref_attn),
                               rtol=2e-2, atol=2e-2)
    print("KERNEL_OK")
</pallas_src>

<mosaic_0001>
module attributes {stable_mosaic.version = 11 : i64} {
  func.func @mha_kernel(%arg0: i32, %arg1: memref<1x8x32xf32, #tpu.memory_space<vmem>>, %arg2: memref<1x8x32xf32, #tpu.memory_space<vmem>>, %arg3: memref<1x8x32xf32, #tpu.memory_space<vmem>>, %arg4: memref<32x32xbf16, #tpu.memory_space<vmem>>, %arg5: memref<1x32xf32, #tpu.memory_space<vmem>>, %arg6: memref<32x32xbf16, #tpu.memory_space<vmem>>, %arg7: memref<1x32xf32, #tpu.memory_space<vmem>>, %arg8: memref<32x32xbf16, #tpu.memory_space<vmem>>, %arg9: memref<1x32xf32, #tpu.memory_space<vmem>>, %arg10: memref<32x32xbf16, #tpu.memory_space<vmem>>, %arg11: memref<1x32xf32, #tpu.memory_space<vmem>>, %arg12: memref<1x32xf32, #tpu.memory_space<vmem>>, %arg13: memref<1x32xf32, #tpu.memory_space<vmem>>, %arg14: memref<1x8x32xf32, #tpu.memory_space<vmem>>, %arg15: memref<1x8x32xf32, #tpu.memory_space<vmem>>, %arg16: memref<1x4x8x8xf32, #tpu.memory_space<vmem>>) attributes {dimension_semantics = [#tpu.dimension_semantics<parallel>], iteration_bounds = array<i64: 2>, scalar_prefetch = 0 : i64, scratch_operands = 0 : i64, tpu.core_type = #tpu.core_type<tc>, window_params = [{transform_indices = @transform_0, window_bounds = array<i64: 1, 8, 32>}, {transform_indices = @transform_1, window_bounds = array<i64: 1, 8, 32>}, {transform_indices = @transform_2, window_bounds = array<i64: 1, 8, 32>}, {pipeline_mode = #tpu.pipeline_mode<synchronous>, transform_indices = @transform_3, window_bounds = array<i64: 32, 32>}, {pipeline_mode = #tpu.pipeline_mode<synchronous>, transform_indices = @transform_4, window_bounds = array<i64: 1, 32>}, {pipeline_mode = #tpu.pipeline_mode<synchronous>, transform_indices = @transform_5, window_bounds = array<i64: 32, 32>}, {pipeline_mode = #tpu.pipeline_mode<synchronous>, transform_indices = @transform_6, window_bounds = array<i64: 1, 32>}, {pipeline_mode = #tpu.pipeline_mode<synchronous>, transform_indices = @transform_7, window_bounds = array<i64: 32, 32>}, {pipeline_mode = #tpu.pipeline_mode<synchronous>, transform_indices = @transform_8, window_bounds = array<i64: 1, 32>}, {pipeline_mode = #tpu.pipeline_mode<synchronous>, transform_indices = @transform_9, window_bounds = array<i64: 32, 32>}, {pipeline_mode = #tpu.pipeline_mode<synchronous>, transform_indices = @transform_10, window_bounds = array<i64: 1, 32>}, {pipeline_mode = #tpu.pipeline_mode<synchronous>, transform_indices = @transform_11, window_bounds = array<i64: 1, 32>}, {pipeline_mode = #tpu.pipeline_mode<synchronous>, transform_indices = @transform_12, window_bounds = array<i64: 1, 32>}, {transform_indices = @transform_13, window_bounds = array<i64: 1, 8, 32>}, {transform_indices = @transform_14, window_bounds = array<i64: 1, 8, 32>}, {transform_indices = @transform_15, window_bounds = array<i64: 1, 4, 8, 8>}]} {
    %c0 = arith.constant 0 : index
    %c0_0 = arith.constant 0 : index
    %c0_1 = arith.constant 0 : index
    %0 = vector.load %arg1[%c0, %c0_0, %c0_1] : memref<1x8x32xf32, #tpu.memory_space<vmem>>, vector<1x8x32xf32>
    %1 = vector.shape_cast %0 : vector<1x8x32xf32> to vector<8x32xf32>
    %c0_2 = arith.constant 0 : index
    %c0_3 = arith.constant 0 : index
    %c0_4 = arith.constant 0 : index
    %2 = vector.load %arg2[%c0_2, %c0_3, %c0_4] : memref<1x8x32xf32, #tpu.memory_space<vmem>>, vector<1x8x32xf32>
    %3 = vector.shape_cast %2 : vector<1x8x32xf32> to vector<8x32xf32>
    %c0_5 = arith.constant 0 : index
    %c0_6 = arith.constant 0 : index
    %c0_7 = arith.constant 0 : index
    %4 = vector.load %arg3[%c0_5, %c0_6, %c0_7] : memref<1x8x32xf32, #tpu.memory_space<vmem>>, vector<1x8x32xf32>
    %5 = vector.shape_cast %4 : vector<1x8x32xf32> to vector<8x32xf32>
    %6 = arith.truncf %1 : vector<8x32xf32> to vector<8x32xbf16>
    %c0_8 = arith.constant 0 : index
    %c0_9 = arith.constant 0 : index
    %7 = vector.load %arg4[%c0_8, %c0_9] : memref<32x32xbf16, #tpu.memory_space<vmem>>, vector<32x32xbf16>
    %cst = arith.constant dense<0.000000e+00> : vector<8x32xf32>
    %8 = tpu.matmul %6, %7, %cst {dimension_numbers = #tpu.dot_dimension_numbers<[1], [0], [0], [1], [0, 0, 1, 1], [], []>} : vector<8x32xbf16>, vector<32x32xbf16>, vector<8x32xf32> -> vector<8x32xf32>
    %c0_10 = arith.constant 0 : index
    %c0_11 = arith.constant 0 : index
    %9 = vector.load %arg5[%c0_10, %c0_11] : memref<1x32xf32, #tpu.memory_space<vmem>>, vector<1x32xf32>
    %10 = vector.broadcast %9 : vector<1x32xf32> to vector<8x32xf32>
    %11 = arith.addf %8, %10 : vector<8x32xf32>
    %12 = arith.truncf %3 : vector<8x32xf32> to vector<8x32xbf16>
    %c0_12 = arith.constant 0 : index
    %c0_13 = arith.constant 0 : index
    %13 = vector.load %arg6[%c0_12, %c0_13] : memref<32x32xbf16, #tpu.memory_space<vmem>>, vector<32x32xbf16>
    %cst_14 = arith.constant dense<0.000000e+00> : vector<8x32xf32>
    %14 = tpu.matmul %12, %13, %cst_14 {dimension_numbers = #tpu.dot_dimension_numbers<[1], [0], [0], [1], [0, 0, 1, 1], [], []>} : vector<8x32xbf16>, vector<32x32xbf16>, vector<8x32xf32> -> vector<8x32xf32>
    %c0_15 = arith.constant 0 : index
    %c0_16 = arith.constant 0 : index
    %15 = vector.load %arg7[%c0_15, %c0_16] : memref<1x32xf32, #tpu.memory_space<vmem>>, vector<1x32xf32>
    %16 = vector.broadcast %15 : vector<1x32xf32> to vector<8x32xf32>
    %17 = arith.addf %14, %16 : vector<8x32xf32>
    %18 = arith.truncf %5 : vector<8x32xf32> to vector<8x32xbf16>
    %c0_17 = arith.constant 0 : index
    %c0_18 = arith.constant 0 : index
    %19 = vector.load %arg8[%c0_17, %c0_18] : memref<32x32xbf16, #tpu.memory_space<vmem>>, vector<32x32xbf16>
    %cst_19 = arith.constant dense<0.000000e+00> : vector<8x32xf32>
    %20 = tpu.matmul %18, %19, %cst_19 {dimension_numbers = #tpu.dot_dimension_numbers<[1], [0], [0], [1], [0, 0, 1, 1], [], []>} : vector<8x32xbf16>, vector<32x32xbf16>, vector<8x32xf32> -> vector<8x32xf32>
    %c0_20 = arith.constant 0 : index
    %c0_21 = arith.constant 0 : index
    %21 = vector.load %arg9[%c0_20, %c0_21] : memref<1x32xf32, #tpu.memory_space<vmem>>, vector<1x32xf32>
    %22 = vector.broadcast %21 : vector<1x32xf32> to vector<8x32xf32>
    %23 = arith.addf %20, %22 : vector<8x32xf32>
    %24 = vector.shape_cast %11 : vector<8x32xf32> to vector<1x8x32xf32>
    %25 = arith.truncf %24 : vector<1x8x32xf32> to vector<1x8x32xbf16>
    %26 = vector.shape_cast %17 : vector<8x32xf32> to vector<1x8x32xf32>
    %27 = arith.truncf %26 : vector<1x8x32xf32> to vector<1x8x32xbf16>
    %28 = vector.shape_cast %23 : vector<8x32xf32> to vector<1x8x32xf32>
    %29 = arith.truncf %28 : vector<1x8x32xf32> to vector<1x8x32xbf16>
    %c0_22 = arith.constant 0 : index
    %c0_23 = arith.constant 0 : index
    %30 = vector.load %arg10[%c0_22, %c0_23] : memref<32x32xbf16, #tpu.memory_space<vmem>>, vector<32x32xbf16>
    %cst_24 = arith.constant 0.000000e+00 : f32
    %31 = vector.broadcast %cst_24 : f32 to vector<8x32xf32>
    %32 = vector.extract_strided_slice %25 {offsets = [0, 0, 0], sizes = [1, 8, 8], strides = [1, 1, 1]} : vector<1x8x32xbf16> to vector<1x8x8xbf16>
    %33 = vector.extract_strided_slice %27 {offsets = [0, 0, 0], sizes = [1, 8, 8], strides = [1, 1, 1]} : vector<1x8x32xbf16> to vector<1x8x8xbf16>
    %34 = vector.extract_strided_slice %29 {offsets = [0, 0, 0], sizes = [1, 8, 8], strides = [1, 1, 1]} : vector<1x8x32xbf16> to vector<1x8x8xbf16>
    "tpu.trace_start"() <{level = 10 : i32, message = "bqd,bkd->bqk"}> : () -> ()
    %cst_25 = arith.constant dense<0.000000e+00> : vector<1x8x8xf32>
    %35 = tpu.matmul %32, %33, %cst_25 {dimension_numbers = #tpu.dot_dimension_numbers<[2], [2], [1], [1], [0, 0, 0, 1, 1, 1], [0], [0]>} : vector<1x8x8xbf16>, vector<1x8x8xbf16>, vector<1x8x8xf32> -> vector<1x8x8xf32>
    "tpu.trace_stop"() : () -> ()
    %cst_26 = arith.constant dense<0xFF800000> : vector<1x8xf32>
    %36 = vector.multi_reduction <maximumf>, %35, %cst_26 [2] : vector<1x8x8xf32> to vector<1x8xf32>
    %37 = vector.shape_cast %36 : vector<1x8xf32> to vector<1x8x1xf32>
    %38 = vector.broadcast %37 : vector<1x8x1xf32> to vector<1x8x8xf32>
    %39 = arith.subf %35, %38 : vector<1x8x8xf32>
    %40 = math.exp %39 : vector<1x8x8xf32>
    %cst_27 = arith.constant dense<0.000000e+00> : vector<1x8xf32>
    %41 = vector.multi_reduction <add>, %40, %cst_27 [2] : vector<1x8x8xf32> to vector<1x8xf32>
    %42 = vector.shape_cast %41 : vector<1x8xf32> to vector<1x8x1xf32>
    %43 = tpu.reciprocal %42 {approx = true} : vector<1x8x1xf32> -> vector<1x8x1xf32>
    %44 = vector.broadcast %43 : vector<1x8x1xf32> to vector<1x8x8xf32>
    %45 = arith.mulf %40, %44 : vector<1x8x8xf32>
    %46 = arith.truncf %45 : vector<1x8x8xf32> to vector<1x8x8xbf16>
    "tpu.trace_start"() <{level = 10 : i32, message = "bqk,bkd->bqd"}> : () -> ()
    %cst_28 = arith.constant dense<0.000000e+00> : vector<1x8x8xf32>
    %47 = tpu.matmul %46, %34, %cst_28 {dimension_numbers = #tpu.dot_dimension_numbers<[2], [1], [1], [2], [0, 0, 0, 1, 1, 2], [0], [0]>} : vector<1x8x8xbf16>, vector<1x8x8xbf16>, vector<1x8x8xf32> -> vector<1x8x8xf32>
    "tpu.trace_stop"() : () -> ()
    %48 = vector.shape_cast %47 : vector<1x8x8xf32> to vector<8x8xf32>
    %49 = arith.truncf %48 : vector<8x8xf32> to vector<8x8xbf16>
    %50 = vector.extract_strided_slice %30 {offsets = [0, 0], sizes = [8, 32], strides = [1, 1]} : vector<32x32xbf16> to vector<8x32xbf16>
    %cst_29 = arith.constant dense<0.000000e+00> : vector<8x32xf32>
    %51 = tpu.matmul %49, %50, %cst_29 {dimension_numbers = #tpu.dot_dimension_numbers<[1], [0], [0], [1], [0, 0, 1, 1], [], []>} : vector<8x8xbf16>, vector<8x32xbf16>, vector<8x32xf32> -> vector<8x32xf32>
    %52 = arith.addf %31, %51 : vector<8x32xf32>
    %c0_30 = arith.constant 0 : index
    %c0_31 = arith.constant 0 : index
    %c0_32 = arith.constant 0 : index
    %c0_33 = arith.constant 0 : index
    %53 = vector.load %arg16[%c0_30, %c0_31, %c0_32, %c0_33] : memref<1x4x8x8xf32, #tpu.memory_space<vmem>>, vector<1x1x8x8xf32>
    %54 = vector.shape_cast %53 : vector<1x1x8x8xf32> to vector<1x8x8xf32>
    %55 = vector.shape_cast %45 : vector<1x8x8xf32> to vector<1x1x8x8xf32>
    tpu.vector_store %arg16[%c0_30, %c0_31, %c0_32, %c0_33], %55 {strides = array<i32>} : memref<1x4x8x8xf32, #tpu.memory_space<vmem>>, vector<1x1x8x8xf32>,
    %56 = vector.extract_strided_slice %25 {offsets = [0, 0, 8], sizes = [1, 8, 8], strides = [1, 1, 1]} : vector<1x8x32xbf16> to vector<1x8x8xbf16>
    %57 = vector.extract_strided_slice %27 {offsets = [0, 0, 8], sizes = [1, 8, 8], strides = [1, 1, 1]} : vector<1x8x32xbf16> to vector<1x8x8xbf16>
    %58 = vector.extract_strided_slice %29 {offsets = [0, 0, 8], sizes = [1, 8, 8], strides = [1, 1, 1]} : vector<1x8x32xbf16> to vector<1x8x8xbf16>
    "tpu.trace_start"() <{level = 10 : i32, message = "bqd,bkd->bqk"}> : () -> ()
    %cst_34 = arith.constant dense<0.000000e+00> : vector<1x8x8xf32>
    %59 = tpu.matmul %56, %57, %cst_34 {dimension_numbers = #tpu.dot_dimension_numbers<[2], [2], [1], [1], [0, 0, 0, 1, 1, 1], [0], [0]>} : vector<1x8x8xbf16>, vector<1x8x8xbf16>, vector<1x8x8xf32> -> vector<1x8x8xf32>
    "tpu.trace_stop"() : () -> ()
    %cst_35 = arith.constant dense<0xFF800000> : vector<1x8xf32>
    %60 = vector.multi_reduction <maximumf>, %59, %cst_35 [2] : vector<1x8x8xf32> to vector<1x8xf32>
    %61 = vector.shape_cast %60 : vector<1x8xf32> to vector<1x8x1xf32>
    %62 = vector.broadcast %61 : vector<1x8x1xf32> to vector<1x8x8xf32>
    %63 = arith.subf %59, %62 : vector<1x8x8xf32>
    %64 = math.exp %63 : vector<1x8x8xf32>
    %cst_36 = arith.constant dense<0.000000e+00> : vector<1x8xf32>
    %65 = vector.multi_reduction <add>, %64, %cst_36 [2] : vector<1x8x8xf32> to vector<1x8xf32>
    %66 = vector.shape_cast %65 : vector<1x8xf32> to vector<1x8x1xf32>
    %67 = tpu.reciprocal %66 {approx = true} : vector<1x8x1xf32> -> vector<1x8x1xf32>
    %68 = vector.broadcast %67 : vector<1x8x1xf32> to vector<1x8x8xf32>
    %69 = arith.mulf %64, %68 : vector<1x8x8xf32>
    %70 = arith.truncf %69 : vector<1x8x8xf32> to vector<1x8x8xbf16>
    "tpu.trace_start"() <{level = 10 : i32, message = "bqk,bkd->bqd"}> : () -> ()
    %cst_37 = arith.constant dense<0.000000e+00> : vector<1x8x8xf32>
    %71 = tpu.matmul %70, %58, %cst_37 {dimension_numbers = #tpu.dot_dimension_numbers<[2], [1], [1], [2], [0, 0, 0, 1, 1, 2], [0], [0]>} : vector<1x8x8xbf16>, vector<1x8x8xbf16>, vector<1x8x8xf32> -> vector<1x8x8xf32>
    "tpu.trace_stop"() : () -> ()
    %72 = vector.shape_cast %71 : vector<1x8x8xf32> to vector<8x8xf32>
    %73 = arith.truncf %72 : vector<8x8xf32> to vector<8x8xbf16>
    %74 = vector.extract_strided_slice %30 {offsets = [8, 0], sizes = [8, 32], strides = [1, 1]} : vector<32x32xbf16> to vector<8x32xbf16>
    %cst_38 = arith.constant dense<0.000000e+00> : vector<8x32xf32>
    %75 = tpu.matmul %73, %74, %cst_38 {dimension_numbers = #tpu.dot_dimension_numbers<[1], [0], [0], [1], [0, 0, 1, 1], [], []>} : vector<8x8xbf16>, vector<8x32xbf16>, vector<8x32xf32> -> vector<8x32xf32>
    %76 = arith.addf %52, %75 : vector<8x32xf32>
    %c0_39 = arith.constant 0 : index
    %c1 = arith.constant 1 : index
    %c0_40 = arith.constant 0 : index
    %c0_41 = arith.constant 0 : index
    %77 = vector.load %arg16[%c0_39, %c1, %c0_40, %c0_41] : memref<1x4x8x8xf32, #tpu.memory_space<vmem>>, vector<1x1x8x8xf32>
    %78 = vector.shape_cast %77 : vector<1x1x8x8xf32> to vector<1x8x8xf32>
    %79 = vector.shape_cast %69 : vector<1x8x8xf32> to vector<1x1x8x8xf32>
    tpu.vector_store %arg16[%c0_39, %c1, %c0_40, %c0_41], %79 {strides = array<i32>} : memref<1x4x8x8xf32, #tpu.memory_space<vmem>>, vector<1x1x8x8xf32>,
    %80 = vector.extract_strided_slice %25 {offsets = [0, 0, 16], sizes = [1, 8, 8], strides = [1, 1, 1]} : vector<1x8x32xbf16> to vector<1x8x8xbf16>
    %81 = vector.extract_strided_slice %27 {offsets = [0, 0, 16], sizes = [1, 8, 8], strides = [1, 1, 1]} : vector<1x8x32xbf16> to vector<1x8x8xbf16>
    %82 = vector.extract_strided_slice %29 {offsets = [0, 0, 16], sizes = [1, 8, 8], strides = [1, 1, 1]} : vector<1x8x32xbf16> to vector<1x8x8xbf16>
    "tpu.trace_start"() <{level = 10 : i32, message = "bqd,bkd->bqk"}> : () -> ()
    %cst_42 = arith.constant dense<0.000000e+00> : vector<1x8x8xf32>
    %83 = tpu.matmul %80, %81, %cst_42 {dimension_numbers = #tpu.dot_dimension_numbers<[2], [2], [1], [1], [0, 0, 0, 1, 1, 1], [0], [0]>} : vector<1x8x8xbf16>, vector<1x8x8xbf16>, vector<1x8x8xf32> -> vector<1x8x8xf32>
    "tpu.trace_stop"() : () -> ()
    %cst_43 = arith.constant dense<0xFF800000> : vector<1x8xf32>
    %84 = vector.multi_reduction <maximumf>, %83, %cst_43 [2] : vector<1x8x8xf32> to vector<1x8xf32>
    %85 = vector.shape_cast %84 : vector<1x8xf32> to vector<1x8x1xf32>
    %86 = vector.broadcast %85 : vector<1x8x1xf32> to vector<1x8x8xf32>
    %87 = arith.subf %83, %86 : vector<1x8x8xf32>
    %88 = math.exp %87 : vector<1x8x8xf32>
    %cst_44 = arith.constant dense<0.000000e+00> : vector<1x8xf32>
    %89 = vector.multi_reduction <add>, %88, %cst_44 [2] : vector<1x8x8xf32> to vector<1x8xf32>
    %90 = vector.shape_cast %89 : vector<1x8xf32> to vector<1x8x1xf32>
    %91 = tpu.reciprocal %90 {approx = true} : vector<1x8x1xf32> -> vector<1x8x1xf32>
    %92 = vector.broadcast %91 : vector<1x8x1xf32> to vector<1x8x8xf32>
    %93 = arith.mulf %88, %92 : vector<1x8x8xf32>
    %94 = arith.truncf %93 : vector<1x8x8xf32> to vector<1x8x8xbf16>
    "tpu.trace_start"() <{level = 10 : i32, message = "bqk,bkd->bqd"}> : () -> ()
    %cst_45 = arith.constant dense<0.000000e+00> : vector<1x8x8xf32>
    %95 = tpu.matmul %94, %82, %cst_45 {dimension_numbers = #tpu.dot_dimension_numbers<[2], [1], [1], [2], [0, 0, 0, 1, 1, 2], [0], [0]>} : vector<1x8x8xbf16>, vector<1x8x8xbf16>, vector<1x8x8xf32> -> vector<1x8x8xf32>
    "tpu.trace_stop"() : () -> ()
    %96 = vector.shape_cast %95 : vector<1x8x8xf32> to vector<8x8xf32>
    %97 = arith.truncf %96 : vector<8x8xf32> to vector<8x8xbf16>
    %98 = vector.extract_strided_slice %30 {offsets = [16, 0], sizes = [8, 32], strides = [1, 1]} : vector<32x32xbf16> to vector<8x32xbf16>
    %cst_46 = arith.constant dense<0.000000e+00> : vector<8x32xf32>
    %99 = tpu.matmul %97, %98, %cst_46 {dimension_numbers = #tpu.dot_dimension_numbers<[1], [0], [0], [1], [0, 0, 1, 1], [], []>} : vector<8x8xbf16>, vector<8x32xbf16>, vector<8x32xf32> -> vector<8x32xf32>
    %100 = arith.addf %76, %99 : vector<8x32xf32>
    %c0_47 = arith.constant 0 : index
    %c2 = arith.constant 2 : index
    %c0_48 = arith.constant 0 : index
    %c0_49 = arith.constant 0 : index
    %101 = vector.load %arg16[%c0_47, %c2, %c0_48, %c0_49] : memref<1x4x8x8xf32, #tpu.memory_space<vmem>>, vector<1x1x8x8xf32>
    %102 = vector.shape_cast %101 : vector<1x1x8x8xf32> to vector<1x8x8xf32>
    %103 = vector.shape_cast %93 : vector<1x8x8xf32> to vector<1x1x8x8xf32>
    tpu.vector_store %arg16[%c0_47, %c2, %c0_48, %c0_49], %103 {strides = array<i32>} : memref<1x4x8x8xf32, #tpu.memory_space<vmem>>, vector<1x1x8x8xf32>,
    %104 = vector.extract_strided_slice %25 {offsets = [0, 0, 24], sizes = [1, 8, 8], strides = [1, 1, 1]} : vector<1x8x32xbf16> to vector<1x8x8xbf16>
    %105 = vector.extract_strided_slice %27 {offsets = [0, 0, 24], sizes = [1, 8, 8], strides = [1, 1, 1]} : vector<1x8x32xbf16> to vector<1x8x8xbf16>
    %106 = vector.extract_strided_slice %29 {offsets = [0, 0, 24], sizes = [1, 8, 8], strides = [1, 1, 1]} : vector<1x8x32xbf16> to vector<1x8x8xbf16>
    "tpu.trace_start"() <{level = 10 : i32, message = "bqd,bkd->bqk"}> : () -> ()
    %cst_50 = arith.constant dense<0.000000e+00> : vector<1x8x8xf32>
    %107 = tpu.matmul %104, %105, %cst_50 {dimension_numbers = #tpu.dot_dimension_numbers<[2], [2], [1], [1], [0, 0, 0, 1, 1, 1], [0], [0]>} : vector<1x8x8xbf16>, vector<1x8x8xbf16>, vector<1x8x8xf32> -> vector<1x8x8xf32>
    "tpu.trace_stop"() : () -> ()
    %cst_51 = arith.constant dense<0xFF800000> : vector<1x8xf32>
    %108 = vector.multi_reduction <maximumf>, %107, %cst_51 [2] : vector<1x8x8xf32> to vector<1x8xf32>
    %109 = vector.shape_cast %108 : vector<1x8xf32> to vector<1x8x1xf32>
    %110 = vector.broadcast %109 : vector<1x8x1xf32> to vector<1x8x8xf32>
    %111 = arith.subf %107, %110 : vector<1x8x8xf32>
    %112 = math.exp %111 : vector<1x8x8xf32>
    %cst_52 = arith.constant dense<0.000000e+00> : vector<1x8xf32>
    %113 = vector.multi_reduction <add>, %112, %cst_52 [2] : vector<1x8x8xf32> to vector<1x8xf32>
    %114 = vector.shape_cast %113 : vector<1x8xf32> to vector<1x8x1xf32>
    %115 = tpu.reciprocal %114 {approx = true} : vector<1x8x1xf32> -> vector<1x8x1xf32>
    %116 = vector.broadcast %115 : vector<1x8x1xf32> to vector<1x8x8xf32>
    %117 = arith.mulf %112, %116 : vector<1x8x8xf32>
    %118 = arith.truncf %117 : vector<1x8x8xf32> to vector<1x8x8xbf16>
    "tpu.trace_start"() <{level = 10 : i32, message = "bqk,bkd->bqd"}> : () -> ()
    %cst_53 = arith.constant dense<0.000000e+00> : vector<1x8x8xf32>
    %119 = tpu.matmul %118, %106, %cst_53 {dimension_numbers = #tpu.dot_dimension_numbers<[2], [1], [1], [2], [0, 0, 0, 1, 1, 2], [0], [0]>} : vector<1x8x8xbf16>, vector<1x8x8xbf16>, vector<1x8x8xf32> -> vector<1x8x8xf32>
    "tpu.trace_stop"() : () -> ()
    %120 = vector.shape_cast %119 : vector<1x8x8xf32> to vector<8x8xf32>
    %121 = arith.truncf %120 : vector<8x8xf32> to vector<8x8xbf16>
    %122 = vector.extract_strided_slice %30 {offsets = [24, 0], sizes = [8, 32], strides = [1, 1]} : vector<32x32xbf16> to vector<8x32xbf16>
    %cst_54 = arith.constant dense<0.000000e+00> : vector<8x32xf32>
    %123 = tpu.matmul %121, %122, %cst_54 {dimension_numbers = #tpu.dot_dimension_numbers<[1], [0], [0], [1], [0, 0, 1, 1], [], []>} : vector<8x8xbf16>, vector<8x32xbf16>, vector<8x32xf32> -> vector<8x32xf32>
    %124 = arith.addf %100, %123 : vector<8x32xf32>
    %c0_55 = arith.constant 0 : index
    %c3 = arith.constant 3 : index
    %c0_56 = arith.constant 0 : index
    %c0_57 = arith.constant 0 : index
    %125 = vector.load %arg16[%c0_55, %c3, %c0_56, %c0_57] : memref<1x4x8x8xf32, #tpu.memory_space<vmem>>, vector<1x1x8x8xf32>
    %126 = vector.shape_cast %125 : vector<1x1x8x8xf32> to vector<1x8x8xf32>
    %127 = vector.shape_cast %117 : vector<1x8x8xf32> to vector<1x1x8x8xf32>
    tpu.vector_store %arg16[%c0_55, %c3, %c0_56, %c0_57], %127 {strides = array<i32>} : memref<1x4x8x8xf32, #tpu.memory_space<vmem>>, vector<1x1x8x8xf32>,
    %c0_58 = arith.constant 0 : index
    %c0_59 = arith.constant 0 : index
    %128 = vector.load %arg11[%c0_58, %c0_59] : memref<1x32xf32, #tpu.memory_space<vmem>>, vector<1x32xf32>
    %129 = vector.broadcast %128 : vector<1x32xf32> to vector<8x32xf32>
    %130 = arith.addf %124, %129 : vector<8x32xf32>
    %131 = arith.addf %1, %130 : vector<8x32xf32>
    %cst_60 = arith.constant dense<0.000000e+00> : vector<8xf32>
    %132 = vector.multi_reduction <add>, %131, %cst_60 [1] : vector<8x32xf32> to vector<8xf32>
    %133 = vector.shape_cast %132 : vector<8xf32> to vector<8x1xf32>
    %cst_61 = arith.constant 3.200000e+01 : f32
    %134 = vector.broadcast %cst_61 : f32 to vector<8x1xf32>
    %135 = arith.divf %133, %134 : vector<8x1xf32>
    %136 = vector.broadcast %135 : vector<8x1xf32> to vector<8x32xf32>
    %137 = arith.subf %131, %136 : vector<8x32xf32>
    %138 = arith.mulf %137, %137 : vector<8x32xf32>
    %cst_62 = arith.constant dense<0.000000e+00> : vector<8xf32>
    %139 = vector.multi_reduction <add>, %138, %cst_62 [1] : vector<8x32xf32> to vector<8xf32>
    %140 = vector.shape_cast %139 : vector<8xf32> to vector<8x1xf32>
    %cst_63 = arith.constant 3.200000e+01 : f32
    %141 = vector.broadcast %cst_63 : f32 to vector<8x1xf32>
    %142 = arith.divf %140, %141 : vector<8x1xf32>
    %cst_64 = arith.constant 9.99999974E-6 : f32
    %143 = vector.broadcast %cst_64 : f32 to vector<8x1xf32>
    %144 = arith.addf %142, %143 : vector<8x1xf32>
    %145 = math.rsqrt %144 : vector<8x1xf32>
    %146 = vector.broadcast %135 : vector<8x1xf32> to vector<8x32xf32>
    %147 = arith.subf %131, %146 : vector<8x32xf32>
    %148 = vector.broadcast %145 : vector<8x1xf32> to vector<8x32xf32>
    %149 = arith.mulf %147, %148 : vector<8x32xf32>
    %c0_65 = arith.constant 0 : index
    %c0_66 = arith.constant 0 : index
    %150 = vector.load %arg12[%c0_65, %c0_66] : memref<1x32xf32, #tpu.memory_space<vmem>>, vector<1x32xf32>
    %151 = vector.broadcast %150 : vector<1x32xf32> to vector<8x32xf32>
    %152 = arith.mulf %149, %151 : vector<8x32xf32>
    %c0_67 = arith.constant 0 : index
    %c0_68 = arith.constant 0 : index
    %153 = vector.load %arg13[%c0_67, %c0_68] : memref<1x32xf32, #tpu.memory_space<vmem>>, vector<1x32xf32>
    %154 = vector.broadcast %153 : vector<1x32xf32> to vector<8x32xf32>
    %155 = arith.addf %152, %154 : vector<8x32xf32>
    %156 = vector.shape_cast %131 : vector<8x32xf32> to vector<1x8x32xf32>
    %c0_69 = arith.constant 0 : index
    %c0_70 = arith.constant 0 : index
    %c0_71 = arith.constant 0 : index
    %157 = vector.load %arg15[%c0_69, %c0_70, %c0_71] : memref<1x8x32xf32, #tpu.memory_space<vmem>>, vector<1x8x32xf32>
    tpu.vector_store %arg15[%c0_69, %c0_70, %c0_71], %156 {strides = array<i32>} : memref<1x8x32xf32, #tpu.memory_space<vmem>>, vector<1x8x32xf32>,
    %158 = vector.shape_cast %155 : vector<8x32xf32> to vector<1x8x32xf32>
    %c0_72 = arith.constant 0 : index
    %c0_73 = arith.constant 0 : index
    %c0_74 = arith.constant 0 : index
    %159 = vector.load %arg14[%c0_72, %c0_73, %c0_74] : memref<1x8x32xf32, #tpu.memory_space<vmem>>, vector<1x8x32xf32>
    tpu.vector_store %arg14[%c0_72, %c0_73, %c0_74], %158 {strides = array<i32>} : memref<1x8x32xf32, #tpu.memory_space<vmem>>, vector<1x8x32xf32>,
    return
  }
  func.func @transform_0(%arg0: i32) -> (i32, i32, i32) {
    %c0_i32 = arith.constant 0 : i32
    %c0_i32_0 = arith.constant 0 : i32
    %c0_i32_1 = arith.constant 0 : i32
    return %arg0, %c0_i32, %c0_i32_0 : i32, i32, i32
  }
  func.func @transform_1(%arg0: i32) -> (i32, i32, i32) {
    %c0_i32 = arith.constant 0 : i32
    %c0_i32_0 = arith.constant 0 : i32
    %c0_i32_1 = arith.constant 0 : i32
    return %arg0, %c0_i32, %c0_i32_0 : i32, i32, i32
  }
  func.func @transform_2(%arg0: i32) -> (i32, i32, i32) {
    %c0_i32 = arith.constant 0 : i32
    %c0_i32_0 = arith.constant 0 : i32
    %c0_i32_1 = arith.constant 0 : i32
    return %arg0, %c0_i32, %c0_i32_0 : i32, i32, i32
  }
  func.func @transform_3(%arg0: i32) -> (i32, i32) {
    %c0_i32 = arith.constant 0 : i32
    %c0_i32_0 = arith.constant 0 : i32
    %c0_i32_1 = arith.constant 0 : i32
    return %c0_i32, %c0_i32_0 : i32, i32
  }
  func.func @transform_4(%arg0: i32) -> (i32, i32) {
    %c0_i32 = arith.constant 0 : i32
    %c0_i32_0 = arith.constant 0 : i32
    %c0_i32_1 = arith.constant 0 : i32
    return %c0_i32, %c0_i32_0 : i32, i32
  }
  func.func @transform_5(%arg0: i32) -> (i32, i32) {
    %c0_i32 = arith.constant 0 : i32
    %c0_i32_0 = arith.constant 0 : i32
    %c0_i32_1 = arith.constant 0 : i32
    return %c0_i32, %c0_i32_0 : i32, i32
  }
  func.func @transform_6(%arg0: i32) -> (i32, i32) {
    %c0_i32 = arith.constant 0 : i32
    %c0_i32_0 = arith.constant 0 : i32
    %c0_i32_1 = arith.constant 0 : i32
    return %c0_i32, %c0_i32_0 : i32, i32
  }
  func.func @transform_7(%arg0: i32) -> (i32, i32) {
    %c0_i32 = arith.constant 0 : i32
    %c0_i32_0 = arith.constant 0 : i32
    %c0_i32_1 = arith.constant 0 : i32
    return %c0_i32, %c0_i32_0 : i32, i32
  }
  func.func @transform_8(%arg0: i32) -> (i32, i32) {
    %c0_i32 = arith.constant 0 : i32
    %c0_i32_0 = arith.constant 0 : i32
    %c0_i32_1 = arith.constant 0 : i32
    return %c0_i32, %c0_i32_0 : i32, i32
  }
  func.func @transform_9(%arg0: i32) -> (i32, i32) {
    %c0_i32 = arith.constant 0 : i32
    %c0_i32_0 = arith.constant 0 : i32
    %c0_i32_1 = arith.constant 0 : i32
    return %c0_i32, %c0_i32_0 : i32, i32
  }
  func.func @transform_10(%arg0: i32) -> (i32, i32) {
    %c0_i32 = arith.constant 0 : i32
    %c0_i32_0 = arith.constant 0 : i32
    %c0_i32_1 = arith.constant 0 : i32
    return %c0_i32, %c0_i32_0 : i32, i32
  }
  func.func @transform_11(%arg0: i32) -> (i32, i32) {
    %c0_i32 = arith.constant 0 : i32
    %c0_i32_0 = arith.constant 0 : i32
    %c0_i32_1 = arith.constant 0 : i32
    return %c0_i32, %c0_i32_0 : i32, i32
  }
  func.func @transform_12(%arg0: i32) -> (i32, i32) {
    %c0_i32 = arith.constant 0 : i32
    %c0_i32_0 = arith.constant 0 : i32
    %c0_i32_1 = arith.constant 0 : i32
    return %c0_i32, %c0_i32_0 : i32, i32
  }
  func.func @transform_13(%arg0: i32) -> (i32, i32, i32) {
    %c0_i32 = arith.constant 0 : i32
    %c0_i32_0 = arith.constant 0 : i32
    %c0_i32_1 = arith.constant 0 : i32
    return %arg0, %c0_i32, %c0_i32_0 : i32, i32, i32
  }
  func.func @transform_14(%arg0: i32) -> (i32, i32, i32) {
    %c0_i32 = arith.constant 0 : i32
    %c0_i32_0 = arith.constant 0 : i32
    %c0_i32_1 = arith.constant 0 : i32
    return %arg0, %c0_i32, %c0_i32_0 : i32, i32, i32
  }
  func.func @transform_15(%arg0: i32) -> (i32, i32, i32, i32) {
    %c0_i32 = arith.constant 0 : i32
    %c0_i32_0 = arith.constant 0 : i32
    %c0_i32_1 = arith.constant 0 : i32
    %c0_i32_2 = arith.constant 0 : i32
    return %arg0, %c0_i32, %c0_i32_0, %c0_i32_1 : i32, i32, i32, i32
  }
}

</mosaic_0001>

<llo_original>
// kernel: tpu_custom_call.1
$region0: #{tpu_custom_call.1}
  #allocation0 [shape = 'u32[]', space=smem, size = 0x4, offset = 0x4, fixed_abs, tag = 'smem constant byte address 0x4 - core index']
  #allocation1 [shape = 'u32[144,128]{1,0:T(1,128)}', space=vmem, size = 0x12000, scoped, tag = 'internal scratch']
  %s0 = inlined_call_operand.hbm [shape: f32[2,8,32], index: 0, kind: input, shape index: {}]
  %s1 = inlined_call_operand.hbm [shape: f32[2,8,32], index: 1, kind: input, shape index: {}]
  %s2 = inlined_call_operand.hbm [shape: f32[2,8,32], index: 2, kind: input, shape index: {}]
  %s3 = inlined_call_operand.hbm [shape: bf16[32,32], index: 3, kind: input, shape index: {}]
  %s4 = inlined_call_operand.vmem [shape: f32[1,32], index: 4, kind: input, shape index: {}]
  %s5 = inlined_call_operand.vmem [shape: bf16[32,32], index: 5, kind: input, shape index: {}]
  %s6 = inlined_call_operand.vmem [shape: f32[1,32], index: 6, kind: input, shape index: {}]
  %s7 = inlined_call_operand.hbm [shape: bf16[32,32], index: 7, kind: input, shape index: {}]
  %s8 = inlined_call_operand.hbm [shape: f32[1,32], index: 8, kind: input, shape index: {}]
  %s9 = inlined_call_operand.vmem [shape: bf16[32,32], index: 9, kind: input, shape index: {}]
  %s10 = inlined_call_operand.vmem [shape: f32[1,32], index: 10, kind: input, shape index: {}]
  %s11 = inlined_call_operand.vmem [shape: f32[1,32], index: 11, kind: input, shape index: {}]
  %s12 = inlined_call_operand.vmem [shape: f32[1,32], index: 12, kind: input, shape index: {}]
  %s13 = inlined_call_operand.hbm [shape: f32[2,8,32], index: 13, kind: output, shape index: {0}]
  %s14 = inlined_call_operand.hbm [shape: f32[2,8,32], index: 14, kind: output, shape index: {1}]
  %s15 = inlined_call_operand.hbm [shape: f32[2,4,8,8], index: 15, kind: output, shape index: {2}]
  %16 = xla_tuple %s13, %s14, %s15
  %s17 = sld [smem:[#allocation0]]
  $region125: #{tpu_custom_call.1} parent=0
    _
  %s19 = ssub.s32 1, %s17
  %s20 = scalar_select 0, %s19, %s17
  $region1: #{tpu_custom_call.1} parent=0
    #allocation2 [shape = 'u8[8192]{0}', space=vmem, size = 0x2000, scoped, tag = 'input window, operand 0']
    #allocation3 [shape = 's32[2]{0}', space=sflag, size = 0x8, scoped, tag = 'scoped memory for tpu_custom_call.1']
    #allocation4 [shape = 's32[2]{0}', space=sflag, size = 0x8, scoped, tag = 'scoped memory for tpu_custom_call.1']
    #allocation5 [shape = 'u8[8192]{0}', space=vmem, size = 0x2000, scoped, tag = 'input window, operand 1']
    #allocation6 [shape = 's32[2]{0}', space=sflag, size = 0x8, scoped, tag = 'scoped memory for tpu_custom_call.1']
    #allocation7 [shape = 'u8[8192]{0}', space=vmem, size = 0x2000, scoped, tag = 'input window, operand 2']
    #allocation8 [shape = 'u8[8192]{0}', space=vmem, size = 0x2000, scoped, tag = 'input window, operand 3, single buffered']
    #allocation9 [shape = 's32[1]{0}', space=sflag, size = 0x4, scoped, tag = 'scoped memory for tpu_custom_call.1']
    #allocation10 [shape = 'u8[8192]{0}', space=vmem, size = 0x2000, scoped, tag = 'input window, operand 7, single buffered']
    #allocation11 [shape = 'u8[512]{0}', space=vmem, size = 0x400, scoped, tag = 'input window, operand 8, single buffered']
    #allocation12 [shape = 's32[1]{0}', space=sflag, size = 0x4, scoped, tag = 'scoped memory for tpu_custom_call.1']
    #allocation13 [shape = 'u8[8192]{0}', space=vmem, size = 0x2000, scoped, tag = 'output window, operand 0']
    #allocation14 [shape = 'u8[8192]{0}', space=vmem, size = 0x2000, scoped, tag = 'output window, operand 1']
    #allocation15 [shape = 's32[2]{0}', space=sflag, size = 0x8, scoped, tag = 'scoped memory for tpu_custom_call.1']
    #allocation16 [shape = 'u8[32768]{0}', space=vmem, size = 0x8000, scoped, tag = 'output window, operand 2']
    %21 = vsyncpa [#allocation3], 0
    %s22 = scalar_lea.sflag [#allocation3], 1
    %23 = vsyncpa %s22, 0
    %24 = vsyncpa [#allocation6], 0
    %s25 = scalar_lea.sflag [#allocation6], 1
    %26 = vsyncpa %s25, 0
    %27 = vsyncpa [#allocation9], 0
    %28 = vsyncpa [#allocation12], 0
    %29 = vsyncpa [#allocation4], 0
    %s30 = scalar_lea.sflag [#allocation4], 1
    %31 = vsyncpa %s30, 0
    %32 = vsyncpa [#allocation15], 0
    %s33 = scalar_lea.sflag [#allocation15], 1
    %34 = vsyncpa %s33, 0
    loop: start=0, step=1, limit=4
    $region2: #{tpu_custom_call.1} parent=1 // loop_pre_header
      _
    $region3: #{tpu_custom_call.1} parent=1 // loop_header
      %s36 = sphi 0, %s40
      %p37 = scmp.ge.s32.totalorder %s36, 4
      %s46 = sphi 0, %s48
      %s49 = sphi 0, %s46
      %s50 = sphi 0, %s49
      %s66 = sphi 0, %s50
      %s72 = sphi 0, %s74
      %s75 = sphi 0, %s72
      %s76 = sphi 0, %s75
      %s92 = sphi 0, %s76
      %s98 = sphi 0, %s100
      %s101 = sphi 0, %s98
      %s102 = sphi 0, %s101
      %s118 = sphi 0, %s102
      %s122 = sphi 0, %s122
      %s124 = sphi 0, %s122
      %s125 = sphi 0, %s124
      %s139 = sphi 0, %s125
      %s143 = sphi 0, %s143
      %s145 = sphi 0, %s143
      %s146 = sphi 0, %s145
      %s160 = sphi 0, %s146
      %s164 = sphi 0, %s164
      %s166 = sphi 0, %s164
      %s167 = sphi 0, %s166
      %s181 = sphi 0, %s167
      %s185 = sphi 0, %s185
      %s187 = sphi 0, %s185
      %s188 = sphi 0, %s187
      %s202 = sphi 0, %s188
      %s206 = sphi 0, %s206
      %s208 = sphi 0, %s206
      %s209 = sphi 0, %s208
      %s223 = sphi 0, %s209
      %s227 = sphi 0, %s227
      %s229 = sphi 0, %s227
      %s230 = sphi 0, %s229
      %s244 = sphi 0, %s230
      %s248 = sphi 0, %s248
      %s250 = sphi 0, %s248
      %s251 = sphi 0, %s250
      %s265 = sphi 0, %s251
      %s269 = sphi 0, %s269
      %s271 = sphi 0, %s269
      %s272 = sphi 0, %s271
      %s286 = sphi 0, %s272
      %s290 = sphi 0, %s290
      %s292 = sphi 0, %s290
      %s293 = sphi 0, %s292
      %s307 = sphi 0, %s293
      %s311 = sphi 0, %s311
      %s313 = sphi 0, %s311
      %s314 = sphi 0, %s313
      %s328 = sphi 0, %s314
      %s334 = sphi 0, %s336
      %s337 = sphi 0, %s334
      %s338 = sphi 0, %s337
      %s354 = sphi 0, %s338
      %s360 = sphi 0, %s362
      %s363 = sphi 0, %s360
      %s364 = sphi 0, %s363
      %s380 = sphi 0, %s364
      %s386 = sphi 0, %s388
      %s389 = sphi 0, %s386
      %s390 = sphi 0, %s389
      %s406 = sphi 0, %s390
    $region4: #{tpu_custom_call.1} parent=1 // loop_header_branch
      %39 = sbr.rel (%p37) target = $region8
    $region5: #{tpu_custom_call.1} parent=1 // loop_body
      %s41 = ssub.s32 %s36, 1
      %s42 = ssub.s32 %s36, 2
      %s43 = sadd.s32 %s36, 1
      %s44 = ssub.s32 %s36, %s43
      %p45 = scmp.eq.s32.totalorder %s44, 0
      %s47 = sadd.s32 %s46, 1
      %s48 = scalar_select %p45, %s46, %s47
      %p51 = pneg %p45
      %p52 = scmp.eq.s32.totalorder %s36, 1
      %p53 = por %p51, %p52
      %p54 = scmp.ne.s32.totalorder %s46, %s49
      %p55 = scmp.eq.s32.totalorder %s36, 0
      %p56 = por %p54, %p55
      %p57 = scmp.ne.s32.totalorder %s46, %s49
      %p58 = scmp.eq.s32.totalorder %s41, 1
      %p59 = por %p57, %p58
      %p60 = scmp.ne.s32.totalorder %s49, %s50
      %p61 = scmp.eq.s32.totalorder %s41, 0
      %p62 = por %p60, %p61
      %p63 = scmp.ne.s32.totalorder %s49, %s50
      %p64 = scmp.eq.s32.totalorder %s42, 1
      %p65 = por %p63, %p64
      %p67 = scmp.ne.s32.totalorder %s50, %s66
      %p68 = scmp.eq.s32.totalorder %s42, 0
      %p69 = por %p67, %p68
      %s70 = ssub.s32 %s36, %s43
      %p71 = scmp.eq.s32.totalorder %s70, 0
      %s73 = sadd.s32 %s72, 1
      %s74 = scalar_select %p71, %s72, %s73
      %p77 = pneg %p71
      %p78 = scmp.eq.s32.totalorder %s36, 1
      %p79 = por %p77, %p78
      %p80 = scmp.ne.s32.totalorder %s72, %s75
      %p81 = scmp.eq.s32.totalorder %s36, 0
      %p82 = por %p80, %p81
      %p83 = scmp.ne.s32.totalorder %s72, %s75
      %p84 = scmp.eq.s32.totalorder %s41, 1
      %p85 = por %p83, %p84
      %p86 = scmp.ne.s32.totalorder %s75, %s76
      %p87 = scmp.eq.s32.totalorder %s41, 0
      %p88 = por %p86, %p87
      %p89 = scmp.ne.s32.totalorder %s75, %s76
      %p90 = scmp.eq.s32.totalorder %s42, 1
      %p91 = por %p89, %p90
      %p93 = scmp.ne.s32.totalorder %s76, %s92
      %p94 = scmp.eq.s32.totalorder %s42, 0
      %p95 = por %p93, %p94
      %s96 = ssub.s32 %s36, %s43
      %p97 = scmp.eq.s32.totalorder %s96, 0
      %s99 = sadd.s32 %s98, 1
      %s100 = scalar_select %p97, %s98, %s99
      %p103 = pneg %p97
      %p104 = scmp.eq.s32.totalorder %s36, 1
      %p105 = por %p103, %p104
      %p106 = scmp.ne.s32.totalorder %s98, %s101
      %p107 = scmp.eq.s32.totalorder %s36, 0
      %p108 = por %p106, %p107
      %p109 = scmp.ne.s32.totalorder %s98, %s101
      %p110 = scmp.eq.s32.totalorder %s41, 1
      %p111 = por %p109, %p110
      %p112 = scmp.ne.s32.totalorder %s101, %s102
      %p113 = scmp.eq.s32.totalorder %s41, 0
      %p114 = por %p112, %p113
      %p115 = scmp.ne.s32.totalorder %s101, %s102
      %p116 = scmp.eq.s32.totalorder %s42, 1
      %p117 = por %p115, %p116
      %p119 = scmp.ne.s32.totalorder %s102, %s118
      %p120 = scmp.eq.s32.totalorder %s42, 0
      %p121 = por %p119, %p120
      %s123 = sadd.s32 %s122, 1
      %p126 = scmp.eq.s32.totalorder %s36, 1
      %p127 = scmp.ne.s32.totalorder %s122, %s124
      %p128 = scmp.eq.s32.totalorder %s36, 0
      %p129 = por %p127, %p128
      %p130 = scmp.ne.s32.totalorder %s122, %s124
      %p131 = scmp.eq.s32.totalorder %s41, 1
      %p132 = por %p130, %p131
      %p133 = scmp.ne.s32.totalorder %s124, %s125
      %p134 = scmp.eq.s32.totalorder %s41, 0
      %p135 = por %p133, %p134
      %p136 = scmp.ne.s32.totalorder %s124, %s125
      %p137 = scmp.eq.s32.totalorder %s42, 1
      %p138 = por %p136, %p137
      %p140 = scmp.ne.s32.totalorder %s125, %s139
      %p141 = scmp.eq.s32.totalorder %s42, 0
      %p142 = por %p140, %p141
      %s144 = sadd.s32 %s143, 1
      %p147 = scmp.eq.s32.totalorder %s36, 1
      %p148 = scmp.ne.s32.totalorder %s143, %s145
      %p149 = scmp.eq.s32.totalorder %s36, 0
      %p150 = por %p148, %p149
      %p151 = scmp.ne.s32.totalorder %s143, %s145
      %p152 = scmp.eq.s32.totalorder %s41, 1
      %p153 = por %p151, %p152
      %p154 = scmp.ne.s32.totalorder %s145, %s146
      %p155 = scmp.eq.s32.totalorder %s41, 0
      %p156 = por %p154, %p155
      %p157 = scmp.ne.s32.totalorder %s145, %s146
      %p158 = scmp.eq.s32.totalorder %s42, 1
      %p159 = por %p157, %p158
      %p161 = scmp.ne.s32.totalorder %s146, %s160
      %p162 = scmp.eq.s32.totalorder %s42, 0
      %p163 = por %p161, %p162
      %s165 = sadd.s32 %s164, 1
      %p168 = scmp.eq.s32.totalorder %s36, 1
      %p169 = scmp.ne.s32.totalorder %s164, %s166
      %p170 = scmp.eq.s32.totalorder %s36, 0
      %p171 = por %p169, %p170
      %p172 = scmp.ne.s32.totalorder %s164, %s166
      %p173 = scmp.eq.s32.totalorder %s41, 1
      %p174 = por %p172, %p173
      %p175 = scmp.ne.s32.totalorder %s166, %s167
      %p176 = scmp.eq.s32.totalorder %s41, 0
      %p177 = por %p175, %p176
      %p178 = scmp.ne.s32.totalorder %s166, %s167
      %p179 = scmp.eq.s32.totalorder %s42, 1
      %p180 = por %p178, %p179
      %p182 = scmp.ne.s32.totalorder %s167, %s181
      %p183 = scmp.eq.s32.totalorder %s42, 0
      %p184 = por %p182, %p183
      %s186 = sadd.s32 %s185, 1
      %p189 = scmp.eq.s32.totalorder %s36, 1
      %p190 = scmp.ne.s32.totalorder %s185, %s187
      %p191 = scmp.eq.s32.totalorder %s36, 0
      %p192 = por %p190, %p191
      %p193 = scmp.ne.s32.totalorder %s185, %s187
      %p194 = scmp.eq.s32.totalorder %s41, 1
      %p195 = por %p193, %p194
      %p196 = scmp.ne.s32.totalorder %s187, %s188
      %p197 = scmp.eq.s32.totalorder %s41, 0
      %p198 = por %p196, %p197
      %p199 = scmp.ne.s32.totalorder %s187, %s188
      %p200 = scmp.eq.s32.totalorder %s42, 1
      %p201 = por %p199, %p200
      %p203 = scmp.ne.s32.totalorder %s188, %s202
      %p204 = scmp.eq.s32.totalorder %s42, 0
      %p205 = por %p203, %p204
      %s207 = sadd.s32 %s206, 1
      %p210 = scmp.eq.s32.totalorder %s36, 1
      %p211 = scmp.ne.s32.totalorder %s206, %s208
      %p212 = scmp.eq.s32.totalorder %s36, 0
      %p213 = por %p211, %p212
      %p214 = scmp.ne.s32.totalorder %s206, %s208
      %p215 = scmp.eq.s32.totalorder %s41, 1
      %p216 = por %p214, %p215
      %p217 = scmp.ne.s32.totalorder %s208, %s209
      %p218 = scmp.eq.s32.totalorder %s41, 0
      %p219 = por %p217, %p218
      %p220 = scmp.ne.s32.totalorder %s208, %s209
      %p221 = scmp.eq.s32.totalorder %s42, 1
      %p222 = por %p220, %p221
      %p224 = scmp.ne.s32.totalorder %s209, %s223
      %p225 = scmp.eq.s32.totalorder %s42, 0
      %p226 = por %p224, %p225
      %s228 = sadd.s32 %s227, 1
      %p231 = scmp.eq.s32.totalorder %s36, 1
      %p232 = scmp.ne.s32.totalorder %s227, %s229
      %p233 = scmp.eq.s32.totalorder %s36, 0
      %p234 = por %p232, %p233
      %p235 = scmp.ne.s32.totalorder %s227, %s229
      %p236 = scmp.eq.s32.totalorder %s41, 1
      %p237 = por %p235, %p236
      %p238 = scmp.ne.s32.totalorder %s229, %s230
      %p239 = scmp.eq.s32.totalorder %s41, 0
      %p240 = por %p238, %p239
      %p241 = scmp.ne.s32.totalorder %s229, %s230
      %p242 = scmp.eq.s32.totalorder %s42, 1
      %p243 = por %p241, %p242
      %p245 = scmp.ne.s32.totalorder %s230, %s244
      %p246 = scmp.eq.s32.totalorder %s42, 0
      %p247 = por %p245, %p246
      %s249 = sadd.s32 %s248, 1
      %p252 = scmp.eq.s32.totalorder %s36, 1
      %p253 = scmp.ne.s32.totalorder %s248, %s250
      %p254 = scmp.eq.s32.totalorder %s36, 0
      %p255 = por %p253, %p254
      %p256 = scmp.ne.s32.totalorder %s248, %s250
      %p257 = scmp.eq.s32.totalorder %s41, 1
      %p258 = por %p256, %p257
      %p259 = scmp.ne.s32.totalorder %s250, %s251
      %p260 = scmp.eq.s32.totalorder %s41, 0
      %p261 = por %p259, %p260
      %p262 = scmp.ne.s32.totalorder %s250, %s251
      %p263 = scmp.eq.s32.totalorder %s42, 1
      %p264 = por %p262, %p263
      %p266 = scmp.ne.s32.totalorder %s251, %s265
      %p267 = scmp.eq.s32.totalorder %s42, 0
      %p268 = por %p266, %p267
      %s270 = sadd.s32 %s269, 1
      %p273 = scmp.eq.s32.totalorder %s36, 1
      %p274 = scmp.ne.s32.totalorder %s269, %s271
      %p275 = scmp.eq.s32.totalorder %s36, 0
      %p276 = por %p274, %p275
      %p277 = scmp.ne.s32.totalorder %s269, %s271
      %p278 = scmp.eq.s32.totalorder %s41, 1
      %p279 = por %p277, %p278
      %p280 = scmp.ne.s32.totalorder %s271, %s272
      %p281 = scmp.eq.s32.totalorder %s41, 0
      %p282 = por %p280, %p281
      %p283 = scmp.ne.s32.totalorder %s271, %s272
      %p284 = scmp.eq.s32.totalorder %s42, 1
      %p285 = por %p283, %p284
      %p287 = scmp.ne.s32.totalorder %s272, %s286
      %p288 = scmp.eq.s32.totalorder %s42, 0
      %p289 = por %p287, %p288
      %s291 = sadd.s32 %s290, 1
      %p294 = scmp.eq.s32.totalorder %s36, 1
      %p295 = scmp.ne.s32.totalorder %s290, %s292
      %p296 = scmp.eq.s32.totalorder %s36, 0
      %p297 = por %p295, %p296
      %p298 = scmp.ne.s32.totalorder %s290, %s292
      %p299 = scmp.eq.s32.totalorder %s41, 1
      %p300 = por %p298, %p299
      %p301 = scmp.ne.s32.totalorder %s292, %s293
      %p302 = scmp.eq.s32.totalorder %s41, 0
      %p303 = por %p301, %p302
      %p304 = scmp.ne.s32.totalorder %s292, %s293
      %p305 = scmp.eq.s32.totalorder %s42, 1
      %p306 = por %p304, %p305
      %p308 = scmp.ne.s32.totalorder %s293, %s307
      %p309 = scmp.eq.s32.totalorder %s42, 0
      %p310 = por %p308, %p309
      %s312 = sadd.s32 %s311, 1
      %p315 = scmp.eq.s32.totalorder %s36, 1
      %p316 = scmp.ne.s32.totalorder %s311, %s313
      %p317 = scmp.eq.s32.totalorder %s36, 0
      %p318 = por %p316, %p317
      %p319 = scmp.ne.s32.totalorder %s311, %s313
      %p320 = scmp.eq.s32.totalorder %s41, 1
      %p321 = por %p319, %p320
      %p322 = scmp.ne.s32.totalorder %s313, %s314
      %p323 = scmp.eq.s32.totalorder %s41, 0
      %p324 = por %p322, %p323
      %p325 = scmp.ne.s32.totalorder %s313, %s314
      %p326 = scmp.eq.s32.totalorder %s42, 1
      %p327 = por %p325, %p326
      %p329 = scmp.ne.s32.totalorder %s314, %s328
      %p330 = scmp.eq.s32.totalorder %s42, 0
      %p331 = por %p329, %p330
      %s332 = ssub.s32 %s36, %s43
      %p333 = scmp.eq.s32.totalorder %s332, 0
      %s335 = sadd.s32 %s334, 1
      %s336 = scalar_select %p333, %s334, %s335
      %p339 = pneg %p333
      %p340 = scmp.eq.s32.totalorder %s36, 1
      %p341 = por %p339, %p340
      %p342 = scmp.ne.s32.totalorder %s334, %s337
      %p343 = scmp.eq.s32.totalorder %s36, 0
      %p344 = por %p342, %p343
      %p345 = scmp.ne.s32.totalorder %s334, %s337
      %p346 = scmp.eq.s32.totalorder %s41, 1
      %p347 = por %p345, %p346
      %p348 = scmp.ne.s32.totalorder %s337, %s338
      %p349 = scmp.eq.s32.totalorder %s41, 0
      %p350 = por %p348, %p349
      %p351 = scmp.ne.s32.totalorder %s337, %s338
      %p352 = scmp.eq.s32.totalorder %s42, 1
      %p353 = por %p351, %p352
      %p355 = scmp.ne.s32.totalorder %s338, %s354
      %p356 = scmp.eq.s32.totalorder %s42, 0
      %p357 = por %p355, %p356
      %s358 = ssub.s32 %s36, %s43
      %p359 = scmp.eq.s32.totalorder %s358, 0
      %s361 = sadd.s32 %s360, 1
      %s362 = scalar_select %p359, %s360, %s361
      %p365 = pneg %p359
      %p366 = scmp.eq.s32.totalorder %s36, 1
      %p367 = por %p365, %p366
      %p368 = scmp.ne.s32.totalorder %s360, %s363
      %p369 = scmp.eq.s32.totalorder %s36, 0
      %p370 = por %p368, %p369
      %p371 = scmp.ne.s32.totalorder %s360, %s363
      %p372 = scmp.eq.s32.totalorder %s41, 1
      %p373 = por %p371, %p372
      %p374 = scmp.ne.s32.totalorder %s363, %s364
      %p375 = scmp.eq.s32.totalorder %s41, 0
      %p376 = por %p374, %p375
      %p377 = scmp.ne.s32.totalorder %s363, %s364
      %p378 = scmp.eq.s32.totalorder %s42, 1
      %p379 = por %p377, %p378
      %p381 = scmp.ne.s32.totalorder %s364, %s380
      %p382 = scmp.eq.s32.totalorder %s42, 0
      %p383 = por %p381, %p382
      %s384 = ssub.s32 %s36, %s43
      %p385 = scmp.eq.s32.totalorder %s384, 0
      %s387 = sadd.s32 %s386, 1
      %s388 = scalar_select %p385, %s386, %s387
      %p391 = pneg %p385
      %p392 = scmp.eq.s32.totalorder %s36, 1
      %p393 = por %p391, %p392
      %p394 = scmp.ne.s32.totalorder %s386, %s389
      %p395 = scmp.eq.s32.totalorder %s36, 0
      %p396 = por %p394, %p395
      %p397 = scmp.ne.s32.totalorder %s386, %s389
      %p398 = scmp.eq.s32.totalorder %s41, 1
      %p399 = por %p397, %p398
      %p400 = scmp.ne.s32.totalorder %s389, %s390
      %p401 = scmp.eq.s32.totalorder %s41, 0
      %p402 = por %p400, %p401
      %p403 = scmp.ne.s32.totalorder %s389, %s390
      %p404 = scmp.eq.s32.totalorder %s42, 1
      %p405 = por %p403, %p404
      %p407 = scmp.ne.s32.totalorder %s390, %s406
      %p408 = scmp.eq.s32.totalorder %s42, 0
      %p409 = por %p407, %p408
      %p410 = scmp.le.s32.totalorder 1, %s36
      %p411 = scmp.lt.s32.totalorder %s36, 3
      %p412 = pnand %p410, %p411
      %p413 = pneg %p412
      // Predicated region
      $region9: #{tpu_custom_call.1} parent=5 // pred_check
        _
      $region10: #{tpu_custom_call.1} parent=5 // pred_check_branch
        %415 = sbr.rel (%p412) target = $region12
      $region11: #{tpu_custom_call.1} parent=5 // pred_region
        %s416 = ssub.s32 %s36, 1
        // Predicated region
        $region13: #{tpu_custom_call.1} parent=11 // pred_check
          %p417 = pneg %p135
        $region14: #{tpu_custom_call.1} parent=11 // pred_check_branch
          %419 = sbr.rel (%p417) target = $region16
        $region15: #{tpu_custom_call.1} parent=11 // pred_region
          %s421 = ssub.s32 256, 256
          %422 = vsyncadd [#allocation9], %s421
          %s423 = sshll.u32 [#allocation8], 4
          %s424 = int_to_ptr.vmem [resolvable:$true] %s423
          %429 = dma.hbm_to_vmem [thread:$0]  %s3, 256, %s424, [#allocation9], 64, 64, 4
        $region16: #{tpu_custom_call.1} parent=11 // pred_fallthru
          _
        // Predicated region
        $region17: #{tpu_custom_call.1} parent=11 // pred_check
          %p430 = pneg %p156
        $region18: #{tpu_custom_call.1} parent=11 // pred_check_branch
          %432 = sbr.rel (%p430) target = $region20
        $region19: #{tpu_custom_call.1} parent=11 // pred_region
          _
        $region20: #{tpu_custom_call.1} parent=11 // pred_fallthru
          _
        // Predicated region
        $region21: #{tpu_custom_call.1} parent=11 // pred_check
          %p433 = pneg %p177
        $region22: #{tpu_custom_call.1} parent=11 // pred_check_branch
          %435 = sbr.rel (%p433) target = $region24
        $region23: #{tpu_custom_call.1} parent=11 // pred_region
          _
        $region24: #{tpu_custom_call.1} parent=11 // pred_fallthru
          _
        // Predicated region
        $region25: #{tpu_custom_call.1} parent=11 // pred_check
          %p436 = pneg %p198
        $region26: #{tpu_custom_call.1} parent=11 // pred_check_branch
          %438 = sbr.rel (%p436) target = $region28
        $region27: #{tpu_custom_call.1} parent=11 // pred_region
          _
        $region28: #{tpu_custom_call.1} parent=11 // pred_fallthru
          _
        // Predicated region
        $region29: #{tpu_custom_call.1} parent=11 // pred_check
          %p439 = pneg %p219
        $region30: #{tpu_custom_call.1} parent=11 // pred_check_branch
          %441 = sbr.rel (%p439) target = $region32
        $region31: #{tpu_custom_call.1} parent=11 // pred_region
          %s443 = ssub.s32 256, 256
          %444 = vsyncadd [#allocation9], %s443
          %s445 = sshll.u32 [#allocation10], 4
          %s446 = int_to_ptr.vmem [resolvable:$true] %s445
          %451 = dma.hbm_to_vmem [thread:$0]  %s7, 256, %s446, [#allocation9], 64, 64, 4
        $region32: #{tpu_custom_call.1} parent=11 // pred_fallthru
          _
        // Predicated region
        $region33: #{tpu_custom_call.1} parent=11 // pred_check
          %p452 = pneg %p240
        $region34: #{tpu_custom_call.1} parent=11 // pred_check_branch
          %454 = sbr.rel (%p452) target = $region36
        $region35: #{tpu_custom_call.1} parent=11 // pred_region
          %s456 = ssub.s32 16, 16
          %457 = vsyncadd [#allocation12], %s456
          %s459 = sshll.u32 [#allocation11], 4
          %s460 = int_to_ptr.vmem [resolvable:$true] %s459
          %462 = dma.hbm_to_vmem [thread:$0]  %s8, 16, %s460, [#allocation12]
        $region36: #{tpu_custom_call.1} parent=11 // pred_fallthru
          _
        // Predicated region
        $region37: #{tpu_custom_call.1} parent=11 // pred_check
          %p463 = pneg %p261
        $region38: #{tpu_custom_call.1} parent=11 // pred_check_branch
          %465 = sbr.rel (%p463) target = $region40
        $region39: #{tpu_custom_call.1} parent=11 // pred_region
          _
        $region40: #{tpu_custom_call.1} parent=11 // pred_fallthru
          _
        // Predicated region
        $region41: #{tpu_custom_call.1} parent=11 // pred_check
          %p466 = pneg %p282
        $region42: #{tpu_custom_call.1} parent=11 // pred_check_branch
          %468 = sbr.rel (%p466) target = $region44
        $region43: #{tpu_custom_call.1} parent=11 // pred_region
          _
        $region44: #{tpu_custom_call.1} parent=11 // pred_fallthru
          _
        // Predicated region
        $region45: #{tpu_custom_call.1} parent=11 // pred_check
          %p469 = pneg %p303
        $region46: #{tpu_custom_call.1} parent=11 // pred_check_branch
          %471 = sbr.rel (%p469) target = $region48
        $region47: #{tpu_custom_call.1} parent=11 // pred_region
          _
        $region48: #{tpu_custom_call.1} parent=11 // pred_fallthru
          _
        // Predicated region
        $region49: #{tpu_custom_call.1} parent=11 // pred_check
          %p472 = pneg %p324
        $region50: #{tpu_custom_call.1} parent=11 // pred_check_branch
          %474 = sbr.rel (%p472) target = $region52
        $region51: #{tpu_custom_call.1} parent=11 // pred_region
          _
        $region52: #{tpu_custom_call.1} parent=11 // pred_fallthru
          _
      $region12: #{tpu_custom_call.1} parent=5 // pred_fallthru
        _
      %p475 = scmp.lt.s32.totalorder %s36, 2
      // Predicated region
      $region53: #{tpu_custom_call.1} parent=5 // pred_check
        %p476 = pneg %p475
      $region54: #{tpu_custom_call.1} parent=5 // pred_check_branch
        %478 = sbr.rel (%p476) target = $region56
      $region55: #{tpu_custom_call.1} parent=5 // pred_region
        // Predicated region
        $region57: #{tpu_custom_call.1} parent=55 // pred_check
          %p479 = pneg %p56
        $region58: #{tpu_custom_call.1} parent=55 // pred_check_branch
          %481 = sbr.rel (%p479) target = $region60
        $region59: #{tpu_custom_call.1} parent=55 // pred_region
          %s482 = sand.u32 %s46, 1
          %s483 = scalar_lea.sflag [#allocation3], %s482
          %s484 = sand.u32 %s46, 1
          %s485 = smul.addr %s484, 8
          %s486 = scalar_lea.vmem [#allocation2], %s485
          %s488 = ssub.s32 128, 128
          %489 = vsyncadd %s483, %s488
          %s490 = smul.addr %s36, 128
          %s491 = scalar_lea.hbm %s0, %s490
          %s493 = sshll.u32 %s486, 4
          %s494 = int_to_ptr.vmem [resolvable:$true] %s493
          %496 = dma.hbm_to_vmem [thread:$0]  %s491, 128, %s494, %s483
        $region60: #{tpu_custom_call.1} parent=55 // pred_fallthru
          _
        // Predicated region
        $region61: #{tpu_custom_call.1} parent=55 // pred_check
          %p497 = pneg %p82
        $region62: #{tpu_custom_call.1} parent=55 // pred_check_branch
          %499 = sbr.rel (%p497) target = $region64
        $region63: #{tpu_custom_call.1} parent=55 // pred_region
          %s500 = sand.u32 %s36, 1
          %s501 = scalar_lea.sflag [#allocation6], %s500
          %s502 = sand.u32 %s72, 1
          %s503 = smul.addr %s502, 8
          %s504 = scalar_lea.vmem [#allocation5], %s503
          %s506 = ssub.s32 128, 128
          %507 = vsyncadd %s501, %s506
          %s508 = smul.addr %s36, 128
          %s509 = scalar_lea.hbm %s1, %s508
          %s511 = sshll.u32 %s504, 4
          %s512 = int_to_ptr.vmem [resolvable:$true] %s511
          %514 = dma.hbm_to_vmem [thread:$0]  %s509, 128, %s512, %s501
        $region64: #{tpu_custom_call.1} parent=55 // pred_fallthru
          _
        // Predicated region
        $region65: #{tpu_custom_call.1} parent=55 // pred_check
          %p515 = pneg %p108
        $region66: #{tpu_custom_call.1} parent=55 // pred_check_branch
          %517 = sbr.rel (%p515) target = $region68
        $region67: #{tpu_custom_call.1} parent=55 // pred_region
          %s518 = sand.u32 %s36, 1
          %s519 = scalar_lea.sflag [#allocation6], %s518
          %s520 = sand.u32 %s98, 1
          %s521 = smul.addr %s520, 8
          %s522 = scalar_lea.vmem [#allocation7], %s521
          %s524 = ssub.s32 128, 128
          %525 = vsyncadd %s519, %s524
          %s526 = smul.addr %s36, 128
          %s527 = scalar_lea.hbm %s2, %s526
          %s529 = sshll.u32 %s522, 4
          %s530 = int_to_ptr.vmem [resolvable:$true] %s529
          %532 = dma.hbm_to_vmem [thread:$0]  %s527, 128, %s530, %s519
        $region68: #{tpu_custom_call.1} parent=55 // pred_fallthru
          _
      $region56: #{tpu_custom_call.1} parent=5 // pred_fallthru
        _
      %p533 = scmp.le.s32.totalorder 1, %s36
      %p534 = scmp.lt.s32.totalorder %s36, 3
      %p535 = pnand %p533, %p534
      %p536 = pneg %p535
      // Predicated region
      $region69: #{tpu_custom_call.1} parent=5 // pred_check
        _
      $region70: #{tpu_custom_call.1} parent=5 // pred_check_branch
        %538 = sbr.rel (%p535) target = $region72
      $region71: #{tpu_custom_call.1} parent=5 // pred_region
        %s539 = ssub.s32 %s36, 1
        %s540 = sand.u32 %s49, 1
        %s541 = scalar_lea.sflag [#allocation3], %s540
        %s542 = sand.u32 %s49, 1
        %s543 = smul.addr %s542, 8
        %s544 = scalar_lea.vmem [#allocation2], %s543
        // Predicated region
        $region73: #{tpu_custom_call.1} parent=71 // pred_check
          %p545 = pneg %p62
        $region74: #{tpu_custom_call.1} parent=71 // pred_check_branch
          %547 = sbr.rel (%p545) target = $region76
        $region75: #{tpu_custom_call.1} parent=71 // pred_region
          %548 = dma.done %s541, 128
        $region76: #{tpu_custom_call.1} parent=71 // pred_fallthru
          _
        %s549 = sand.u32 %s41, 1
        %s550 = scalar_lea.sflag [#allocation6], %s549
        %s551 = sand.u32 %s75, 1
        %s552 = smul.addr %s551, 8
        %s553 = scalar_lea.vmem [#allocation5], %s552
        // Predicated region
        $region77: #{tpu_custom_call.1} parent=71 // pred_check
          %p554 = pneg %p88
        $region78: #{tpu_custom_call.1} parent=71 // pred_check_branch
          %556 = sbr.rel (%p554) target = $region80
        $region79: #{tpu_custom_call.1} parent=71 // pred_region
          %557 = dma.done %s550, 128
        $region80: #{tpu_custom_call.1} parent=71 // pred_fallthru
          _
        %s558 = sand.u32 %s41, 1
        %s559 = scalar_lea.sflag [#allocation6], %s558
        %s560 = sand.u32 %s101, 1
        %s561 = smul.addr %s560, 8
        %s562 = scalar_lea.vmem [#allocation7], %s561
        // Predicated region
        $region81: #{tpu_custom_call.1} parent=71 // pred_check
          %p563 = pneg %p114
        $region82: #{tpu_custom_call.1} parent=71 // pred_check_branch
          %565 = sbr.rel (%p563) target = $region84
        $region83: #{tpu_custom_call.1} parent=71 // pred_region
          %566 = dma.done %s559, 128
        $region84: #{tpu_custom_call.1} parent=71 // pred_fallthru
          _
        // Predicated region
        $region85: #{tpu_custom_call.1} parent=71 // pred_check
          %p567 = pneg %p135
        $region86: #{tpu_custom_call.1} parent=71 // pred_check_branch
          %569 = sbr.rel (%p567) target = $region88
        $region87: #{tpu_custom_call.1} parent=71 // pred_region
          %570 = dma.done [#allocation9], 256
        $region88: #{tpu_custom_call.1} parent=71 // pred_fallthru
          _
        // Predicated region
        $region89: #{tpu_custom_call.1} parent=71 // pred_check
          %p571 = pneg %p219
        $region90: #{tpu_custom_call.1} parent=71 // pred_check_branch
          %573 = sbr.rel (%p571) target = $region92
        $region91: #{tpu_custom_call.1} parent=71 // pred_region
          %574 = dma.done [#allocation9], 256
        $region92: #{tpu_custom_call.1} parent=71 // pred_fallthru
          _
        // Predicated region
        $region93: #{tpu_custom_call.1} parent=71 // pred_check
          %p575 = pneg %p240
        $region94: #{tpu_custom_call.1} parent=71 // pred_check_branch
          %577 = sbr.rel (%p575) target = $region96
        $region95: #{tpu_custom_call.1} parent=71 // pred_region
          %578 = dma.done [#allocation12], 16
        $region96: #{tpu_custom_call.1} parent=71 // pred_fallthru
          _
        %s579 = sand.u32 %s49, 1
        %s580 = scalar_lea.sflag [#allocation3], %s579
        %s581 = sand.u32 %s49, 1
        %s582 = smul.addr %s581, 8
        %s583 = scalar_lea.vmem [#allocation2], %s582
        %p584 = pneg %p62
        %p585 = pneg %p59
        %s586 = sand.u32 %s41, 1
        %s587 = scalar_lea.sflag [#allocation6], %s586
        %s588 = sand.u32 %s75, 1
        %s589 = smul.addr %s588, 8
        %s590 = scalar_lea.vmem [#allocation5], %s589
        %p591 = pneg %p88
        %p592 = pneg %p85
        %s593 = sand.u32 %s41, 1
        %s594 = scalar_lea.sflag [#allocation6], %s593
        %s595 = sand.u32 %s101, 1
        %s596 = smul.addr %s595, 8
        %s597 = scalar_lea.vmem [#allocation7], %s596
        %p598 = pneg %p114
        %p599 = pneg %p111
        %p600 = pneg %p135
        %p601 = pneg %p132
        %p602 = pneg %p156
        %p603 = pneg %p153
        %p604 = pneg %p177
        %p605 = pneg %p174
        %p606 = pneg %p198
        %p607 = pneg %p195
        %p608 = pneg %p219
        %p609 = pneg %p216
        %p610 = pneg %p240
        %p611 = pneg %p237
        %p612 = pneg %p261
        %p613 = pneg %p258
        %p614 = pneg %p282
        %p615 = pneg %p279
        %p616 = pneg %p303
        %p617 = pneg %p300
        %p618 = pneg %p324
        %p619 = pneg %p321
        %p620 = pneg %p350
        %p621 = pneg %p347
        %s622 = sand.u32 %s337, 1
        %s623 = scalar_lea.sflag [#allocation4], %s622
        %s624 = sand.u32 %s337, 1
        %s625 = smul.addr %s624, 8
        %s626 = scalar_lea.vmem [#allocation13], %s625
        %p627 = pneg %p376
        %p628 = pneg %p373
        %s629 = sand.u32 %s41, 1
        %s630 = scalar_lea.sflag [#allocation15], %s629
        %s631 = sand.u32 %s363, 1
        %s632 = smul.addr %s631, 8
        %s633 = scalar_lea.vmem [#allocation14], %s632
        %p634 = pneg %p402
        %p635 = pneg %p399
        %s636 = sand.u32 %s41, 1
        %s637 = scalar_lea.sflag [#allocation15], %s636
        %s638 = sand.u32 %s389, 1
        %s639 = smul.addr %s638, 32
        %s640 = scalar_lea.vmem [#allocation16], %s639
        %v642 = vld [vmem:[%s544] sm:$0xff]
        %v643 = vld [vmem:[%s553] sm:$0xff]
        %v644 = vld [vmem:[%s562] sm:$0xff]
        %v645 = vpack.c.bf16 %v642, %v642
        %v646 = vld [vmem:[#allocation8] sm:$0xf]
        %v647 = vld [vmem:[#allocation8 + $0x4] sm:$0xf]
        %v648 = vld [vmem:[#allocation8 + $0x8] sm:$0xf]
        %v649 = vld [vmem:[#allocation8 + $0xc] sm:$0xf]
        %v650 = vld [vmem:[%s4] sm:$0x1]
        %v652 = vlaneseq
        %v653 = vshrl.u32 %v652, 7
        %v654 = vsub.s32 0, %v653
        %v655 = vrot.slane %v650, %v654
        %v661 = vunpack.c.l.b16 %v646
        %v662 = vunpack.c.l.b16 %v647
        %v663 = vunpack.c.l.b16 %v648
        %v664 = vunpack.c.l.b16 %v649
        %v665 = vpack.c.b16 %v662, %v661
        %v666 = vpack.c.b16 %v664, %v663
        %vm669 = vcmask 261120
        %v671 = vsel %vm669, %v645, 0
        %673 = vmatprep.subr.bf16.mxu0 0
        %674 = vmatpush1.bf16.msra.mxu0 %v665
        %675 = vmatprep.subr.bf16.mxu0 0
        %676 = vmatpush1.bf16.msra.mxu0 %v666
        %677 = vmatprep.subr.bf16.mxu0 0
        %678 = vmatpush1.bf16.msra.mxu0 0
        %679 = vmatprep.subr.bf16.mxu0 0
        %680 = vmatpush1.bf16.msra.mxu0 0
        %681 = vmatprep.subr.bf16.mxu0 0
        %682 = vmatpush1.bf16.msra.mxu0 0
        %683 = vmatprep.subr.bf16.mxu0 0
        %684 = vmatpush1.bf16.msra.mxu0 0
        %685 = vmatprep.subr.bf16.mxu0 0
        %686 = vmatpush1.bf16.msra.mxu0 0
        %687 = vmatprep.subr.bf16.mxu0 0
        %688 = vmatpush1.bf16.msra.mxu0 0
        %689 = vmatprep.subr.bf16.mxu0 0
        %690 = vmatpush1.bf16.msra.mxu0 0
        %691 = vmatprep.subr.bf16.mxu0 0
        %692 = vmatpush1.bf16.msra.mxu0 0
        %693 = vmatprep.subr.bf16.mxu0 0
        %694 = vmatpush1.bf16.msra.mxu0 0
        %695 = vmatprep.subr.bf16.mxu0 0
        %696 = vmatpush1.bf16.msra.mxu0 0
        %697 = vmatprep.subr.bf16.mxu0 0
        %698 = vmatpush1.bf16.msra.mxu0 0
        %699 = vmatprep.subr.bf16.mxu0 0
        %700 = vmatpush1.bf16.msra.mxu0 0
        %701 = vmatprep.subr.bf16.mxu0 0
        %702 = vmatpush1.bf16.msra.mxu0 0
        %703 = vmatprep.subr.bf16.mxu0 0
        %704 = vmatpush1.bf16.msra.mxu0 0
        %705 = vmatprep.mubr.bf16.mxu0 0
        %706 = vmatmul.mubr.bf16.gmra.mrb[0].mxu0 %v671
        %v707 = vpop.f32.mrb[0].mxu0
        %v708 = vadd.f32 %v655, %v707
        %v709 = vpop.f32.mrb[0].mxu0
        %v710 = vpop.f32.mrb[0].mxu0
        %v711 = vpop.f32.mrb[0].mxu0
        %712 = vdwg.mxu0
        %v713 = vpack.c.bf16 %v643, %v643
        %v714 = vld [vmem:[%s5] sm:$0xf]
        %v715 = vld [vmem:[%s5 + $0x4] sm:$0xf]
        %v716 = vld [vmem:[%s5 + $0x8] sm:$0xf]
        %v717 = vld [vmem:[%s5 + $0xc] sm:$0xf]
        %v718 = vld [vmem:[%s6] sm:$0x1]
        %v720 = vlaneseq
        %v721 = vshrl.u32 %v720, 7
        %v722 = vsub.s32 0, %v721
        %v723 = vrot.slane %v718, %v722
        %v729 = vunpack.c.l.b16 %v714
        %v730 = vunpack.c.l.b16 %v715
        %v731 = vunpack.c.l.b16 %v716
        %v732 = vunpack.c.l.b16 %v717
        %v733 = vpack.c.b16 %v730, %v729
        %v734 = vpack.c.b16 %v732, %v731
        %v738 = vsel %vm669, %v713, 0
        %740 = vmatprep.subr.bf16.mxu0 0
        %741 = vmatpush1.bf16.msra.mxu0 %v733
        %742 = vmatprep.subr.bf16.mxu0 0
        %743 = vmatpush1.bf16.msra.mxu0 %v734
        %744 = vmatprep.subr.bf16.mxu0 0
        %745 = vmatpush1.bf16.msra.mxu0 0
        %746 = vmatprep.subr.bf16.mxu0 0
        %747 = vmatpush1.bf16.msra.mxu0 0
        %748 = vmatprep.subr.bf16.mxu0 0
        %749 = vmatpush1.bf16.msra.mxu0 0
        %750 = vmatprep.subr.bf16.mxu0 0
        %751 = vmatpush1.bf16.msra.mxu0 0
        %752 = vmatprep.subr.bf16.mxu0 0
        %753 = vmatpush1.bf16.msra.mxu0 0
        %754 = vmatprep.subr.bf16.mxu0 0
        %755 = vmatpush1.bf16.msra.mxu0 0
        %756 = vmatprep.subr.bf16.mxu0 0
        %757 = vmatpush1.bf16.msra.mxu0 0
        %758 = vmatprep.subr.bf16.mxu0 0
        %759 = vmatpush1.bf16.msra.mxu0 0
        %760 = vmatprep.subr.bf16.mxu0 0
        %761 = vmatpush1.bf16.msra.mxu0 0
        %762 = vmatprep.subr.bf16.mxu0 0
        %763 = vmatpush1.bf16.msra.mxu0 0
        %764 = vmatprep.subr.bf16.mxu0 0
        %765 = vmatpush1.bf16.msra.mxu0 0
        %766 = vmatprep.subr.bf16.mxu0 0
        %767 = vmatpush1.bf16.msra.mxu0 0
        %768 = vmatprep.subr.bf16.mxu0 0
        %769 = vmatpush1.bf16.msra.mxu0 0
        %770 = vmatprep.subr.bf16.mxu0 0
        %771 = vmatpush1.bf16.msra.mxu0 0
        %772 = vmatprep.mubr.bf16.mxu0 0
        %773 = vmatmul.mubr.bf16.gmra.mrb[0].mxu0 %v738
        %v774 = vpop.f32.mrb[0].mxu0
        %v775 = vadd.f32 %v723, %v774
        %v776 = vpop.f32.mrb[0].mxu0
        %v777 = vpop.f32.mrb[0].mxu0
        %v778 = vpop.f32.mrb[0].mxu0
        %779 = vdwg.mxu0
        %v780 = vpack.c.bf16 %v644, %v644
        %v781 = vld [vmem:[#allocation10] sm:$0xf]
        %v782 = vld [vmem:[#allocation10 + $0x4] sm:$0xf]
        %v783 = vld [vmem:[#allocation10 + $0x8] sm:$0xf]
        %v784 = vld [vmem:[#allocation10 + $0xc] sm:$0xf]
        %v785 = vld [vmem:[#allocation11] sm:$0x1]
        %v787 = vlaneseq
        %v788 = vshrl.u32 %v787, 7
        %v789 = vsub.s32 0, %v788
        %v790 = vrot.slane %v785, %v789
        %v796 = vunpack.c.l.b16 %v781
        %v797 = vunpack.c.l.b16 %v782
        %v798 = vunpack.c.l.b16 %v783
        %v799 = vunpack.c.l.b16 %v784
        %v800 = vpack.c.b16 %v797, %v796
        %v801 = vpack.c.b16 %v799, %v798
        %v805 = vsel %vm669, %v780, 0
        %807 = vmatprep.subr.bf16.mxu0 0
        %808 = vmatpush1.bf16.msra.mxu0 %v800
        %809 = vmatprep.subr.bf16.mxu0 0
        %810 = vmatpush1.bf16.msra.mxu0 %v801
        %811 = vmatprep.subr.bf16.mxu0 0
        %812 = vmatpush1.bf16.msra.mxu0 0
        %813 = vmatprep.subr.bf16.mxu0 0
        %814 = vmatpush1.bf16.msra.mxu0 0
        %815 = vmatprep.subr.bf16.mxu0 0
        %816 = vmatpush1.bf16.msra.mxu0 0
        %817 = vmatprep.subr.bf16.mxu0 0
        %818 = vmatpush1.bf16.msra.mxu0 0
        %819 = vmatprep.subr.bf16.mxu0 0
        %820 = vmatpush1.bf16.msra.mxu0 0
        %821 = vmatprep.subr.bf16.mxu0 0
        %822 = vmatpush1.bf16.msra.mxu0 0
        %823 = vmatprep.subr.bf16.mxu0 0
        %824 = vmatpush1.bf16.msra.mxu0 0
        %825 = vmatprep.subr.bf16.mxu0 0
        %826 = vmatpush1.bf16.msra.mxu0 0
        %827 = vmatprep.subr.bf16.mxu0 0
        %828 = vmatpush1.bf16.msra.mxu0 0
        %829 = vmatprep.subr.bf16.mxu0 0
        %830 = vmatpush1.bf16.msra.mxu0 0
        %831 = vmatprep.subr.bf16.mxu0 0
        %832 = vmatpush1.bf16.msra.mxu0 0
        %833 = vmatprep.subr.bf16.mxu0 0
        %834 = vmatpush1.bf16.msra.mxu0 0
        %835 = vmatprep.subr.bf16.mxu0 0
        %836 = vmatpush1.bf16.msra.mxu0 0
        %837 = vmatprep.subr.bf16.mxu0 0
        %838 = vmatpush1.bf16.msra.mxu0 0
        %839 = vmatprep.mubr.bf16.mxu0 0
        %840 = vmatmul.mubr.bf16.gmra.mrb[0].mxu0 %v805
        %v841 = vpop.f32.mrb[0].mxu0
        %v842 = vadd.f32 %v790, %v841
        %v843 = vpop.f32.mrb[0].mxu0
        %v844 = vpop.f32.mrb[0].mxu0
        %v845 = vpop.f32.mrb[0].mxu0
        %846 = vdwg.mxu0
        %v847 = vpack.c.bf16 %v708, %v708
        %v848 = vpack.c.bf16 %v775, %v775
        %v849 = vpack.c.bf16 %v842, %v842
        %v850 = vld [vmem:[%s9] sm:$0xf]
        %v851 = vld [vmem:[%s9 + $0x4] sm:$0xf]
        %v852 = vld [vmem:[%s9 + $0x8] sm:$0xf]
        %v853 = vld [vmem:[%s9 + $0xc] sm:$0xf]
        %vm854 = vcmask 64512
        %v856 = vsel %vm854, %v847, 0
        %v859 = vsel %vm854, %v848, 0
        %861 = vmatprep.subr.bf16.mxu0 0
        %862 = vmatpush1.bf16.xpose.msra.mxu0 %v859
        %863 = vmatprep.subr.bf16.mxu0 0
        %864 = vmatpush1.bf16.xpose.msra.mxu0 0
        %865 = vmatprep.subr.bf16.mxu0 0
        %866 = vmatpush1.bf16.xpose.msra.mxu0 0
        %867 = vmatprep.subr.bf16.mxu0 0
        %868 = vmatpush1.bf16.xpose.msra.mxu0 0
        %869 = vmatprep.subr.bf16.mxu0 0
        %870 = vmatpush1.bf16.xpose.msra.mxu0 0
        %871 = vmatprep.subr.bf16.mxu0 0
        %872 = vmatpush1.bf16.xpose.msra.mxu0 0
        %873 = vmatprep.subr.bf16.mxu0 0
        %874 = vmatpush1.bf16.xpose.msra.mxu0 0
        %875 = vmatprep.subr.bf16.mxu0 0
        %876 = vmatpush1.bf16.xpose.msra.mxu0 0
        %877 = vmatprep.subr.bf16.mxu0 0
        %878 = vmatpush1.bf16.xpose.msra.mxu0 0
        %879 = vmatprep.subr.bf16.mxu0 0
        %880 = vmatpush1.bf16.xpose.msra.mxu0 0
        %881 = vmatprep.subr.bf16.mxu0 0
        %882 = vmatpush1.bf16.xpose.msra.mxu0 0
        %883 = vmatprep.subr.bf16.mxu0 0
        %884 = vmatpush1.bf16.xpose.msra.mxu0 0
        %885 = vmatprep.subr.bf16.mxu0 0
        %886 = vmatpush1.bf16.xpose.msra.mxu0 0
        %887 = vmatprep.subr.bf16.mxu0 0
        %888 = vmatpush1.bf16.xpose.msra.mxu0 0
        %889 = vmatprep.subr.bf16.mxu0 0
        %890 = vmatpush1.bf16.xpose.msra.mxu0 0
        %891 = vmatprep.subr.bf16.mxu0 0
        %892 = vmatpush1.bf16.xpose.msra.mxu0 0
        %893 = vmatprep.mubr.bf16.mxu0 0
        %894 = vmatmul.mubr.bf16.gmra.mrb[0].mxu0 %v856
        %v895 = vpop.f32.mrb[0].mxu0
        %v896 = vadd.f32 0.0, %v895
        %v897 = vpop.f32.mrb[0].mxu0
        %v898 = vpop.f32.mrb[0].mxu0
        %v899 = vpop.f32.mrb[0].mxu0
        %900 = vdwg.mxu0
        %v901 = vsel %vm854, %v896, -inf
        %902 = vmax.xlane.f32.xlu0 %v901
        %v903 = vpop.xlane.xlu0 %902
        %v904 = vsub.f32 %v896, %v903
        %v905 = vmul.f32 %v904, 1.442695
        %v906 = vpow.pop %v905
        %v907 = vsel %vm854, %v906, 0.0
        %908 = vadd.xlane.f32.xlu0 %v907
        %v909 = vpop.xlane.xlu0 %908
        %v910 = vrcp.pop %v909
        %v911 = vmul.f32 %v906, %v910
        %v912 = vpack.c.bf16 %v911, %v911
        %v914 = vsel %vm854, %v912, 0
        %vm916 = vcmask 1043456
        %v918 = vsel %vm916, %v849, 0
        %920 = vmatprep.subr.bf16.mxu0 0
        %921 = vmatpush1.bf16.msra.mxu0 %v918
        %922 = vmatprep.subr.bf16.mxu0 0
        %923 = vmatpush1.bf16.msra.mxu0 0
        %924 = vmatprep.subr.bf16.mxu0 0
        %925 = vmatpush1.bf16.msra.mxu0 0
        %926 = vmatprep.subr.bf16.mxu0 0
        %927 = vmatpush1.bf16.msra.mxu0 0
        %928 = vmatprep.subr.bf16.mxu0 0
        %929 = vmatpush1.bf16.msra.mxu0 0
        %930 = vmatprep.subr.bf16.mxu0 0
        %931 = vmatpush1.bf16.msra.mxu0 0
        %932 = vmatprep.subr.bf16.mxu0 0
        %933 = vmatpush1.bf16.msra.mxu0 0
        %934 = vmatprep.subr.bf16.mxu0 0
        %935 = vmatpush1.bf16.msra.mxu0 0
        %936 = vmatprep.subr.bf16.mxu0 0
        %937 = vmatpush1.bf16.msra.mxu0 0
        %938 = vmatprep.subr.bf16.mxu0 0
        %939 = vmatpush1.bf16.msra.mxu0 0
        %940 = vmatprep.subr.bf16.mxu0 0
        %941 = vmatpush1.bf16.msra.mxu0 0
        %942 = vmatprep.subr.bf16.mxu0 0
        %943 = vmatpush1.bf16.msra.mxu0 0
        %944 = vmatprep.subr.bf16.mxu0 0
        %945 = vmatpush1.bf16.msra.mxu0 0
        %946 = vmatprep.subr.bf16.mxu0 0
        %947 = vmatpush1.bf16.msra.mxu0 0
        %948 = vmatprep.subr.bf16.mxu0 0
        %949 = vmatpush1.bf16.msra.mxu0 0
        %950 = vmatprep.subr.bf16.mxu0 0
        %951 = vmatpush1.bf16.msra.mxu0 0
        %952 = vmatprep.mubr.bf16.mxu0 0
        %953 = vmatmul.mubr.bf16.gmra.mrb[0].mxu0 %v914
        %v954 = vpop.f32.mrb[0].mxu0
        %v955 = vadd.f32 0.0, %v954
        %v956 = vpop.f32.mrb[0].mxu0
        %v957 = vpop.f32.mrb[0].mxu0
        %v958 = vpop.f32.mrb[0].mxu0
        %959 = vdwg.mxu0
        %v960 = vpack.c.bf16 %v955, %v955
        %961 = vst.msk [vmem:[%s640] sm:$0xff] %vm854, %v911
        %963 = vrot.lane.b32.xlu0 %v847, 120
        %v964 = vpop.permute.xlu0 %963
        %966 = vrot.lane.b32.xlu0 %v848, 120
        %v967 = vpop.permute.xlu0 %966
        %v969 = vsel %vm854, %v964, 0
        %v972 = vsel %vm854, %v967, 0
        %974 = vmatprep.subr.bf16.mxu0 0
        %975 = vmatpush1.bf16.xpose.msra.mxu0 %v972
        %976 = vmatprep.subr.bf16.mxu0 0
        %977 = vmatpush1.bf16.xpose.msra.mxu0 0
        %978 = vmatprep.subr.bf16.mxu0 0
        %979 = vmatpush1.bf16.xpose.msra.mxu0 0
        %980 = vmatprep.subr.bf16.mxu0 0
        %981 = vmatpush1.bf16.xpose.msra.mxu0 0
        %982 = vmatprep.subr.bf16.mxu0 0
        %983 = vmatpush1.bf16.xpose.msra.mxu0 0
        %984 = vmatprep.subr.bf16.mxu0 0
        %985 = vmatpush1.bf16.xpose.msra.mxu0 0
        %986 = vmatprep.subr.bf16.mxu0 0
        %987 = vmatpush1.bf16.xpose.msra.mxu0 0
        %988 = vmatprep.subr.bf16.mxu0 0
        %989 = vmatpush1.bf16.xpose.msra.mxu0 0
        %990 = vmatprep.subr.bf16.mxu0 0
        %991 = vmatpush1.bf16.xpose.msra.mxu0 0
        %992 = vmatprep.subr.bf16.mxu0 0
        %993 = vmatpush1.bf16.xpose.msra.mxu0 0
        %994 = vmatprep.subr.bf16.mxu0 0
        %995 = vmatpush1.bf16.xpose.msra.mxu0 0
        %996 = vmatprep.subr.bf16.mxu0 0
        %997 = vmatpush1.bf16.xpose.msra.mxu0 0
        %998 = vmatprep.subr.bf16.mxu0 0
        %999 = vmatpush1.bf16.xpose.msra.mxu0 0
        %1000 = vmatprep.subr.bf16.mxu0 0
        %1001 = vmatpush1.bf16.xpose.msra.mxu0 0
        %1002 = vmatprep.subr.bf16.mxu0 0
        %1003 = vmatpush1.bf16.xpose.msra.mxu0 0
        %1004 = vmatprep.subr.bf16.mxu0 0
        %1005 = vmatpush1.bf16.xpose.msra.mxu0 0
        %1006 = vmatprep.mubr.bf16.mxu0 0
        %1007 = vmatmul.mubr.bf16.gmra.mrb[0].mxu0 %v969
        %v1008 = vpop.f32.mrb[0].mxu0
        %v1009 = vadd.f32 0.0, %v1008
        %v1010 = vpop.f32.mrb[0].mxu0
        %v1011 = vpop.f32.mrb[0].mxu0
        %v1012 = vpop.f32.mrb[0].mxu0
        %1013 = vdwg.mxu0
        %v1014 = vsel %vm854, %v1009, -inf
        %1015 = vmax.xlane.f32.xlu0 %v1014
        %v1016 = vpop.xlane.xlu0 %1015
        %v1017 = vsub.f32 %v1009, %v1016
        %v1018 = vmul.f32 %v1017, 1.442695
        %v1019 = vpow.pop %v1018
        %v1020 = vsel %vm854, %v1019, 0.0
        %1021 = vadd.xlane.f32.xlu0 %v1020
        %v1022 = vpop.xlane.xlu0 %1021
        %v1023 = vrcp.pop %v1022
        %v1024 = vmul.f32 %v1019, %v1023
        %v1025 = vpack.c.bf16 %v1024, %v1024
        %1027 = vrot.lane.b32.xlu0 %v849, 120
        %v1028 = vpop.permute.xlu0 %1027
        %v1030 = vsel %vm854, %v1025, 0
        %v1033 = vsel %vm916, %v1028, 0
        %1035 = vmatprep.subr.bf16.mxu0 0
        %1036 = vmatpush1.bf16.msra.mxu0 %v1033
        %1037 = vmatprep.subr.bf16.mxu0 0
        %1038 = vmatpush1.bf16.msra.mxu0 0
        %1039 = vmatprep.subr.bf16.mxu0 0
        %1040 = vmatpush1.bf16.msra.mxu0 0
        %1041 = vmatprep.subr.bf16.mxu0 0
        %1042 = vmatpush1.bf16.msra.mxu0 0
        %1043 = vmatprep.subr.bf16.mxu0 0
        %1044 = vmatpush1.bf16.msra.mxu0 0
        %1045 = vmatprep.subr.bf16.mxu0 0
        %1046 = vmatpush1.bf16.msra.mxu0 0
        %1047 = vmatprep.subr.bf16.mxu0 0
        %1048 = vmatpush1.bf16.msra.mxu0 0
        %1049 = vmatprep.subr.bf16.mxu0 0
        %1050 = vmatpush1.bf16.msra.mxu0 0
        %1051 = vmatprep.subr.bf16.mxu0 0
        %1052 = vmatpush1.bf16.msra.mxu0 0
        %1053 = vmatprep.subr.bf16.mxu0 0
        %1054 = vmatpush1.bf16.msra.mxu0 0
        %1055 = vmatprep.subr.bf16.mxu0 0
        %1056 = vmatpush1.bf16.msra.mxu0 0
        %1057 = vmatprep.subr.bf16.mxu0 0
        %1058 = vmatpush1.bf16.msra.mxu0 0
        %1059 = vmatprep.subr.bf16.mxu0 0
        %1060 = vmatpush1.bf16.msra.mxu0 0
        %1061 = vmatprep.subr.bf16.mxu0 0
        %1062 = vmatpush1.bf16.msra.mxu0 0
        %1063 = vmatprep.subr.bf16.mxu0 0
        %1064 = vmatpush1.bf16.msra.mxu0 0
        %1065 = vmatprep.subr.bf16.mxu0 0
        %1066 = vmatpush1.bf16.msra.mxu0 0
        %1067 = vmatprep.mubr.bf16.mxu0 0
        %1068 = vmatmul.mubr.bf16.gmra.mrb[0].mxu0 %v1030
        %v1069 = vpop.f32.mrb[0].mxu0
        %v1070 = vadd.f32 0.0, %v1069
        %v1071 = vpop.f32.mrb[0].mxu0
        %v1072 = vpop.f32.mrb[0].mxu0
        %v1073 = vpop.f32.mrb[0].mxu0
        %1074 = vdwg.mxu0
        %v1075 = vpack.c.bf16 %v1070, %v1070
        %v1077 = vsel %vm854, %v1075, 0
        %v1080 = vsel %vm916, %v851, 0
        %1082 = vmatprep.subr.bf16.mxu0 0
        %1083 = vmatpush1.bf16.msra.mxu0 %v1080
        %1084 = vmatprep.subr.bf16.mxu0 0
        %1085 = vmatpush1.bf16.msra.mxu0 0
        %1086 = vmatprep.subr.bf16.mxu0 0
        %1087 = vmatpush1.bf16.msra.mxu0 0
        %1088 = vmatprep.subr.bf16.mxu0 0
        %1089 = vmatpush1.bf16.msra.mxu0 0
        %1090 = vmatprep.subr.bf16.mxu0 0
        %1091 = vmatpush1.bf16.msra.mxu0 0
        %1092 = vmatprep.subr.bf16.mxu0 0
        %1093 = vmatpush1.bf16.msra.mxu0 0
        %1094 = vmatprep.subr.bf16.mxu0 0
        %1095 = vmatpush1.bf16.msra.mxu0 0
        %1096 = vmatprep.subr.bf16.mxu0 0
        %1097 = vmatpush1.bf16.msra.mxu0 0
        %1098 = vmatprep.subr.bf16.mxu0 0
        %1099 = vmatpush1.bf16.msra.mxu0 0
        %1100 = vmatprep.subr.bf16.mxu0 0
        %1101 = vmatpush1.bf16.msra.mxu0 0
        %1102 = vmatprep.subr.bf16.mxu0 0
        %1103 = vmatpush1.bf16.msra.mxu0 0
        %1104 = vmatprep.subr.bf16.mxu0 0
        %1105 = vmatpush1.bf16.msra.mxu0 0
        %1106 = vmatprep.subr.bf16.mxu0 0
        %1107 = vmatpush1.bf16.msra.mxu0 0
        %1108 = vmatprep.subr.bf16.mxu0 0
        %1109 = vmatpush1.bf16.msra.mxu0 0
        %1110 = vmatprep.subr.bf16.mxu0 0
        %1111 = vmatpush1.bf16.msra.mxu0 0
        %1112 = vmatprep.subr.bf16.mxu0 0
        %1113 = vmatpush1.bf16.msra.mxu0 0
        %1114 = vmatprep.mubr.bf16.mxu0 0
        %1115 = vmatmul.mubr.bf16.gmra.mrb[0].mxu0 %v1077
        %v1116 = vpop.f32.mrb[0].mxu0
        %v1117 = vadd.f32 0.0, %v1116
        %v1118 = vpop.f32.mrb[0].mxu0
        %v1119 = vpop.f32.mrb[0].mxu0
        %v1120 = vpop.f32.mrb[0].mxu0
        %1121 = vdwg.mxu0
        %v1123 = vsel %vm854, %v960, 0
        %v1126 = vsel %vm916, %v850, 0
        %1128 = vmatprep.subr.bf16.mxu0 0
        %1129 = vmatpush1.bf16.msra.mxu0 %v1126
        %1130 = vmatprep.subr.bf16.mxu0 0
        %1131 = vmatpush1.bf16.msra.mxu0 0
        %1132 = vmatprep.subr.bf16.mxu0 0
        %1133 = vmatpush1.bf16.msra.mxu0 0
        %1134 = vmatprep.subr.bf16.mxu0 0
        %1135 = vmatpush1.bf16.msra.mxu0 0
        %1136 = vmatprep.subr.bf16.mxu0 0
        %1137 = vmatpush1.bf16.msra.mxu0 0
        %1138 = vmatprep.subr.bf16.mxu0 0
        %1139 = vmatpush1.bf16.msra.mxu0 0
        %1140 = vmatprep.subr.bf16.mxu0 0
        %1141 = vmatpush1.bf16.msra.mxu0 0
        %1142 = vmatprep.subr.bf16.mxu0 0
        %1143 = vmatpush1.bf16.msra.mxu0 0
        %1144 = vmatprep.subr.bf16.mxu0 0
        %1145 = vmatpush1.bf16.msra.mxu0 0
        %1146 = vmatprep.subr.bf16.mxu0 0
        %1147 = vmatpush1.bf16.msra.mxu0 0
        %1148 = vmatprep.subr.bf16.mxu0 0
        %1149 = vmatpush1.bf16.msra.mxu0 0
        %1150 = vmatprep.subr.bf16.mxu0 0
        %1151 = vmatpush1.bf16.msra.mxu0 0
        %1152 = vmatprep.subr.bf16.mxu0 0
        %1153 = vmatpush1.bf16.msra.mxu0 0
        %1154 = vmatprep.subr.bf16.mxu0 0
        %1155 = vmatpush1.bf16.msra.mxu0 0
        %1156 = vmatprep.subr.bf16.mxu0 0
        %1157 = vmatpush1.bf16.msra.mxu0 0
        %1158 = vmatprep.subr.bf16.mxu0 0
        %1159 = vmatpush1.bf16.msra.mxu0 0
        %1160 = vmatprep.mubr.bf16.mxu0 0
        %1161 = vmatmul.mubr.bf16.gmra.mrb[0].mxu0 %v1123
        %v1162 = vpop.f32.mrb[0].mxu0
        %v1163 = vadd.f32 %v1117, %v1162
        %v1164 = vpop.f32.mrb[0].mxu0
        %v1165 = vpop.f32.mrb[0].mxu0
        %v1166 = vpop.f32.mrb[0].mxu0
        %1167 = vdwg.mxu0
        %s1168 = scalar_lea.vmem %s640, 8 [#allocation16]
        %1169 = vst.msk [vmem:[%s1168] sm:$0xff] %vm854, %v1024
        %1170 = vrot.lane.b32.xlu0 %v847, 112
        %v1171 = vpop.permute.xlu0 %1170
        %1172 = vrot.lane.b32.xlu0 %v848, 112
        %v1173 = vpop.permute.xlu0 %1172
        %v1175 = vsel %vm854, %v1171, 0
        %v1178 = vsel %vm854, %v1173, 0
        %1180 = vmatprep.subr.bf16.mxu0 0
        %1181 = vmatpush1.bf16.xpose.msra.mxu0 %v1178
        %1182 = vmatprep.subr.bf16.mxu0 0
        %1183 = vmatpush1.bf16.xpose.msra.mxu0 0
        %1184 = vmatprep.subr.bf16.mxu0 0
        %1185 = vmatpush1.bf16.xpose.msra.mxu0 0
        %1186 = vmatprep.subr.bf16.mxu0 0
        %1187 = vmatpush1.bf16.xpose.msra.mxu0 0
        %1188 = vmatprep.subr.bf16.mxu0 0
        %1189 = vmatpush1.bf16.xpose.msra.mxu0 0
        %1190 = vmatprep.subr.bf16.mxu0 0
        %1191 = vmatpush1.bf16.xpose.msra.mxu0 0
        %1192 = vmatprep.subr.bf16.mxu0 0
        %1193 = vmatpush1.bf16.xpose.msra.mxu0 0
        %1194 = vmatprep.subr.bf16.mxu0 0
        %1195 = vmatpush1.bf16.xpose.msra.mxu0 0
        %1196 = vmatprep.subr.bf16.mxu0 0
        %1197 = vmatpush1.bf16.xpose.msra.mxu0 0
        %1198 = vmatprep.subr.bf16.mxu0 0
        %1199 = vmatpush1.bf16.xpose.msra.mxu0 0
        %1200 = vmatprep.subr.bf16.mxu0 0
        %1201 = vmatpush1.bf16.xpose.msra.mxu0 0
        %1202 = vmatprep.subr.bf16.mxu0 0
        %1203 = vmatpush1.bf16.xpose.msra.mxu0 0
        %1204 = vmatprep.subr.bf16.mxu0 0
        %1205 = vmatpush1.bf16.xpose.msra.mxu0 0
        %1206 = vmatprep.subr.bf16.mxu0 0
        %1207 = vmatpush1.bf16.xpose.msra.mxu0 0
        %1208 = vmatprep.subr.bf16.mxu0 0
        %1209 = vmatpush1.bf16.xpose.msra.mxu0 0
        %1210 = vmatprep.subr.bf16.mxu0 0
        %1211 = vmatpush1.bf16.xpose.msra.mxu0 0
        %1212 = vmatprep.mubr.bf16.mxu0 0
        %1213 = vmatmul.mubr.bf16.gmra.mrb[0].mxu0 %v1175
        %v1214 = vpop.f32.mrb[0].mxu0
        %v1215 = vadd.f32 0.0, %v1214
        %v1216 = vpop.f32.mrb[0].mxu0
        %v1217 = vpop.f32.mrb[0].mxu0
        %v1218 = vpop.f32.mrb[0].mxu0
        %1219 = vdwg.mxu0
        %v1220 = vsel %vm854, %v1215, -inf
        %1221 = vmax.xlane.f32.xlu0 %v1220
        %v1222 = vpop.xlane.xlu0 %1221
        %v1223 = vsub.f32 %v1215, %v1222
        %v1224 = vmul.f32 %v1223, 1.442695
        %v1225 = vpow.pop %v1224
        %v1226 = vsel %vm854, %v1225, 0.0
        %1227 = vadd.xlane.f32.xlu0 %v1226
        %v1228 = vpop.xlane.xlu0 %1227
        %v1229 = vrcp.pop %v1228
        %v1230 = vmul.f32 %v1225, %v1229
        %v1231 = vpack.c.bf16 %v1230, %v1230
        %1232 = vrot.lane.b32.xlu0 %v849, 112
        %v1233 = vpop.permute.xlu0 %1232
        %v1235 = vsel %vm854, %v1231, 0
        %v1238 = vsel %vm916, %v1233, 0
        %1240 = vmatprep.subr.bf16.mxu0 0
        %1241 = vmatpush1.bf16.msra.mxu0 %v1238
        %1242 = vmatprep.subr.bf16.mxu0 0
        %1243 = vmatpush1.bf16.msra.mxu0 0
        %1244 = vmatprep.subr.bf16.mxu0 0
        %1245 = vmatpush1.bf16.msra.mxu0 0
        %1246 = vmatprep.subr.bf16.mxu0 0
        %1247 = vmatpush1.bf16.msra.mxu0 0
        %1248 = vmatprep.subr.bf16.mxu0 0
        %1249 = vmatpush1.bf16.msra.mxu0 0
        %1250 = vmatprep.subr.bf16.mxu0 0
        %1251 = vmatpush1.bf16.msra.mxu0 0
        %1252 = vmatprep.subr.bf16.mxu0 0
        %1253 = vmatpush1.bf16.msra.mxu0 0
        %1254 = vmatprep.subr.bf16.mxu0 0
        %1255 = vmatpush1.bf16.msra.mxu0 0
        %1256 = vmatprep.subr.bf16.mxu0 0
        %1257 = vmatpush1.bf16.msra.mxu0 0
        %1258 = vmatprep.subr.bf16.mxu0 0
        %1259 = vmatpush1.bf16.msra.mxu0 0
        %1260 = vmatprep.subr.bf16.mxu0 0
        %1261 = vmatpush1.bf16.msra.mxu0 0
        %1262 = vmatprep.subr.bf16.mxu0 0
        %1263 = vmatpush1.bf16.msra.mxu0 0
        %1264 = vmatprep.subr.bf16.mxu0 0
        %1265 = vmatpush1.bf16.msra.mxu0 0
        %1266 = vmatprep.subr.bf16.mxu0 0
        %1267 = vmatpush1.bf16.msra.mxu0 0
        %1268 = vmatprep.subr.bf16.mxu0 0
        %1269 = vmatpush1.bf16.msra.mxu0 0
        %1270 = vmatprep.subr.bf16.mxu0 0
        %1271 = vmatpush1.bf16.msra.mxu0 0
        %1272 = vmatprep.mubr.bf16.mxu0 0
        %1273 = vmatmul.mubr.bf16.gmra.mrb[0].mxu0 %v1235
        %v1274 = vpop.f32.mrb[0].mxu0
        %v1275 = vadd.f32 0.0, %v1274
        %v1276 = vpop.f32.mrb[0].mxu0
        %v1277 = vpop.f32.mrb[0].mxu0
        %v1278 = vpop.f32.mrb[0].mxu0
        %1279 = vdwg.mxu0
        %v1280 = vpack.c.bf16 %v1275, %v1275
        %v1282 = vsel %vm854, %v1280, 0
        %v1285 = vsel %vm916, %v852, 0
        %1287 = vmatprep.subr.bf16.mxu0 0
        %1288 = vmatpush1.bf16.msra.mxu0 %v1285
        %1289 = vmatprep.subr.bf16.mxu0 0
        %1290 = vmatpush1.bf16.msra.mxu0 0
        %1291 = vmatprep.subr.bf16.mxu0 0
        %1292 = vmatpush1.bf16.msra.mxu0 0
        %1293 = vmatprep.subr.bf16.mxu0 0
        %1294 = vmatpush1.bf16.msra.mxu0 0
        %1295 = vmatprep.subr.bf16.mxu0 0
        %1296 = vmatpush1.bf16.msra.mxu0 0
        %1297 = vmatprep.subr.bf16.mxu0 0
        %1298 = vmatpush1.bf16.msra.mxu0 0
        %1299 = vmatprep.subr.bf16.mxu0 0
        %1300 = vmatpush1.bf16.msra.mxu0 0
        %1301 = vmatprep.subr.bf16.mxu0 0
        %1302 = vmatpush1.bf16.msra.mxu0 0
        %1303 = vmatprep.subr.bf16.mxu0 0
        %1304 = vmatpush1.bf16.msra.mxu0 0
        %1305 = vmatprep.subr.bf16.mxu0 0
        %1306 = vmatpush1.bf16.msra.mxu0 0
        %1307 = vmatprep.subr.bf16.mxu0 0
        %1308 = vmatpush1.bf16.msra.mxu0 0
        %1309 = vmatprep.subr.bf16.mxu0 0
        %1310 = vmatpush1.bf16.msra.mxu0 0
        %1311 = vmatprep.subr.bf16.mxu0 0
        %1312 = vmatpush1.bf16.msra.mxu0 0
        %1313 = vmatprep.subr.bf16.mxu0 0
        %1314 = vmatpush1.bf16.msra.mxu0 0
        %1315 = vmatprep.subr.bf16.mxu0 0
        %1316 = vmatpush1.bf16.msra.mxu0 0
        %1317 = vmatprep.subr.bf16.mxu0 0
        %1318 = vmatpush1.bf16.msra.mxu0 0
        %1319 = vmatprep.mubr.bf16.mxu0 0
        %1320 = vmatmul.mubr.bf16.gmra.mrb[0].mxu0 %v1282
        %v1321 = vpop.f32.mrb[0].mxu0
        %v1322 = vadd.f32 0.0, %v1321
        %v1323 = vpop.f32.mrb[0].mxu0
        %v1324 = vpop.f32.mrb[0].mxu0
        %v1325 = vpop.f32.mrb[0].mxu0
        %1326 = vdwg.mxu0
        %v1327 = vadd.f32 %v1163, %v1322
        %s1328 = scalar_lea.vmem %s640, 16 [#allocation16]
        %1329 = vst.msk [vmem:[%s1328] sm:$0xff] %vm854, %v1230
        %1330 = vrot.lane.b32.xlu0 %v847, 104
        %v1331 = vpop.permute.xlu0 %1330
        %1332 = vrot.lane.b32.xlu0 %v848, 104
        %v1333 = vpop.permute.xlu0 %1332
        %v1335 = vsel %vm854, %v1331, 0
        %v1338 = vsel %vm854, %v1333, 0
        %1340 = vmatprep.subr.bf16.mxu0 0
        %1341 = vmatpush1.bf16.xpose.msra.mxu0 %v1338
        %1342 = vmatprep.subr.bf16.mxu0 0
        %1343 = vmatpush1.bf16.xpose.msra.mxu0 0
        %1344 = vmatprep.subr.bf16.mxu0 0
        %1345 = vmatpush1.bf16.xpose.msra.mxu0 0
        %1346 = vmatprep.subr.bf16.mxu0 0
        %1347 = vmatpush1.bf16.xpose.msra.mxu0 0
        %1348 = vmatprep.subr.bf16.mxu0 0
        %1349 = vmatpush1.bf16.xpose.msra.mxu0 0
        %1350 = vmatprep.subr.bf16.mxu0 0
        %1351 = vmatpush1.bf16.xpose.msra.mxu0 0
        %1352 = vmatprep.subr.bf16.mxu0 0
        %1353 = vmatpush1.bf16.xpose.msra.mxu0 0
        %1354 = vmatprep.subr.bf16.mxu0 0
        %1355 = vmatpush1.bf16.xpose.msra.mxu0 0
        %1356 = vmatprep.subr.bf16.mxu0 0
        %1357 = vmatpush1.bf16.xpose.msra.mxu0 0
        %1358 = vmatprep.subr.bf16.mxu0 0
        %1359 = vmatpush1.bf16.xpose.msra.mxu0 0
        %1360 = vmatprep.subr.bf16.mxu0 0
        %1361 = vmatpush1.bf16.xpose.msra.mxu0 0
        %1362 = vmatprep.subr.bf16.mxu0 0
        %1363 = vmatpush1.bf16.xpose.msra.mxu0 0
        %1364 = vmatprep.subr.bf16.mxu0 0
        %1365 = vmatpush1.bf16.xpose.msra.mxu0 0
        %1366 = vmatprep.subr.bf16.mxu0 0
        %1367 = vmatpush1.bf16.xpose.msra.mxu0 0
        %1368 = vmatprep.subr.bf16.mxu0 0
        %1369 = vmatpush1.bf16.xpose.msra.mxu0 0
        %1370 = vmatprep.subr.bf16.mxu0 0
        %1371 = vmatpush1.bf16.xpose.msra.mxu0 0
        %1372 = vmatprep.mubr.bf16.mxu0 0
        %1373 = vmatmul.mubr.bf16.gmra.mrb[0].mxu0 %v1335
        %v1374 = vpop.f32.mrb[0].mxu0
        %v1375 = vadd.f32 0.0, %v1374
        %v1376 = vpop.f32.mrb[0].mxu0
        %v1377 = vpop.f32.mrb[0].mxu0
        %v1378 = vpop.f32.mrb[0].mxu0
        %1379 = vdwg.mxu0
        %v1380 = vsel %vm854, %v1375, -inf
        %1381 = vmax.xlane.f32.xlu0 %v1380
        %v1382 = vpop.xlane.xlu0 %1381
        %v1383 = vsub.f32 %v1375, %v1382
        %v1384 = vmul.f32 %v1383, 1.442695
        %v1385 = vpow.pop %v1384
        %v1386 = vsel %vm854, %v1385, 0.0
        %1387 = vadd.xlane.f32.xlu0 %v1386
        %v1388 = vpop.xlane.xlu0 %1387
        %v1389 = vrcp.pop %v1388
        %v1390 = vmul.f32 %v1385, %v1389
        %v1391 = vpack.c.bf16 %v1390, %v1390
        %1392 = vrot.lane.b32.xlu0 %v849, 104
        %v1393 = vpop.permute.xlu0 %1392
        %v1395 = vsel %vm854, %v1391, 0
        %v1398 = vsel %vm916, %v1393, 0
        %1400 = vmatprep.subr.bf16.mxu0 0
        %1401 = vmatpush1.bf16.msra.mxu0 %v1398
        %1402 = vmatprep.subr.bf16.mxu0 0
        %1403 = vmatpush1.bf16.msra.mxu0 0
        %1404 = vmatprep.subr.bf16.mxu0 0
        %1405 = vmatpush1.bf16.msra.mxu0 0
        %1406 = vmatprep.subr.bf16.mxu0 0
        %1407 = vmatpush1.bf16.msra.mxu0 0
        %1408 = vmatprep.subr.bf16.mxu0 0
        %1409 = vmatpush1.bf16.msra.mxu0 0
        %1410 = vmatprep.subr.bf16.mxu0 0
        %1411 = vmatpush1.bf16.msra.mxu0 0
        %1412 = vmatprep.subr.bf16.mxu0 0
        %1413 = vmatpush1.bf16.msra.mxu0 0
        %1414 = vmatprep.subr.bf16.mxu0 0
        %1415 = vmatpush1.bf16.msra.mxu0 0
        %1416 = vmatprep.subr.bf16.mxu0 0
        %1417 = vmatpush1.bf16.msra.mxu0 0
        %1418 = vmatprep.subr.bf16.mxu0 0
        %1419 = vmatpush1.bf16.msra.mxu0 0
        %1420 = vmatprep.subr.bf16.mxu0 0
        %1421 = vmatpush1.bf16.msra.mxu0 0
        %1422 = vmatprep.subr.bf16.mxu0 0
        %1423 = vmatpush1.bf16.msra.mxu0 0
        %1424 = vmatprep.subr.bf16.mxu0 0
        %1425 = vmatpush1.bf16.msra.mxu0 0
        %1426 = vmatprep.subr.bf16.mxu0 0
        %1427 = vmatpush1.bf16.msra.mxu0 0
        %1428 = vmatprep.subr.bf16.mxu0 0
        %1429 = vmatpush1.bf16.msra.mxu0 0
        %1430 = vmatprep.subr.bf16.mxu0 0
        %1431 = vmatpush1.bf16.msra.mxu0 0
        %1432 = vmatprep.mubr.bf16.mxu0 0
        %1433 = vmatmul.mubr.bf16.gmra.mrb[0].mxu0 %v1395
        %v1434 = vpop.f32.mrb[0].mxu0
        %v1435 = vadd.f32 0.0, %v1434
        %v1436 = vpop.f32.mrb[0].mxu0
        %v1437 = vpop.f32.mrb[0].mxu0
        %v1438 = vpop.f32.mrb[0].mxu0
        %1439 = vdwg.mxu0
        %v1440 = vpack.c.bf16 %v1435, %v1435
        %v1442 = vsel %vm854, %v1440, 0
        %v1445 = vsel %vm916, %v853, 0
        %1447 = vmatprep.subr.bf16.mxu0 0
        %1448 = vmatpush1.bf16.msra.mxu0 %v1445
        %1449 = vmatprep.subr.bf16.mxu0 0
        %1450 = vmatpush1.bf16.msra.mxu0 0
        %1451 = vmatprep.subr.bf16.mxu0 0
        %1452 = vmatpush1.bf16.msra.mxu0 0
        %1453 = vmatprep.subr.bf16.mxu0 0
        %1454 = vmatpush1.bf16.msra.mxu0 0
        %1455 = vmatprep.subr.bf16.mxu0 0
        %1456 = vmatpush1.bf16.msra.mxu0 0
        %1457 = vmatprep.subr.bf16.mxu0 0
        %1458 = vmatpush1.bf16.msra.mxu0 0
        %1459 = vmatprep.subr.bf16.mxu0 0
        %1460 = vmatpush1.bf16.msra.mxu0 0
        %1461 = vmatprep.subr.bf16.mxu0 0
        %1462 = vmatpush1.bf16.msra.mxu0 0
        %1463 = vmatprep.subr.bf16.mxu0 0
        %1464 = vmatpush1.bf16.msra.mxu0 0
        %1465 = vmatprep.subr.bf16.mxu0 0
        %1466 = vmatpush1.bf16.msra.mxu0 0
        %1467 = vmatprep.subr.bf16.mxu0 0
        %1468 = vmatpush1.bf16.msra.mxu0 0
        %1469 = vmatprep.subr.bf16.mxu0 0
        %1470 = vmatpush1.bf16.msra.mxu0 0
        %1471 = vmatprep.subr.bf16.mxu0 0
        %1472 = vmatpush1.bf16.msra.mxu0 0
        %1473 = vmatprep.subr.bf16.mxu0 0
        %1474 = vmatpush1.bf16.msra.mxu0 0
        %1475 = vmatprep.subr.bf16.mxu0 0
        %1476 = vmatpush1.bf16.msra.mxu0 0
        %1477 = vmatprep.subr.bf16.mxu0 0
        %1478 = vmatpush1.bf16.msra.mxu0 0
        %1479 = vmatprep.mubr.bf16.mxu0 0
        %1480 = vmatmul.mubr.bf16.gmra.mrb[0].mxu0 %v1442
        %v1481 = vpop.f32.mrb[0].mxu0
        %v1482 = vadd.f32 0.0, %v1481
        %v1483 = vpop.f32.mrb[0].mxu0
        %v1484 = vpop.f32.mrb[0].mxu0
        %v1485 = vpop.f32.mrb[0].mxu0
        %1486 = vdwg.mxu0
        %v1487 = vadd.f32 %v1327, %v1482
        %s1488 = scalar_lea.vmem %s640, 24 [#allocation16]
        %1489 = vst.msk [vmem:[%s1488] sm:$0xff] %vm854, %v1390
        %v1490 = vld [vmem:[%s10] sm:$0x1]
        %v1492 = vlaneseq
        %v1493 = vshrl.u32 %v1492, 7
        %v1494 = vsub.s32 0, %v1493
        %v1495 = vrot.slane %v1490, %v1494
        %v1497 = vadd.f32 %v1487, %v1495
        %v1498 = vadd.f32 %v642, %v1497
        %v1499 = vsel %vm669, %v1498, 0.0
        %1500 = vadd.xlane.f32.xlu0 %v1499
        %v1501 = vpop.xlane.xlu0 %1500
        %v1502 = vrcp.pop 32.0
        %v1503 = vmul.f32 %v1501, %v1502
        %v1504 = vsub.f32 %v1498, %v1503
        %v1505 = vmul.f32 %v1504, %v1504
        %v1506 = vsel %vm669, %v1505, 0.0
        %1507 = vadd.xlane.f32.xlu0 %v1506
        %v1508 = vpop.xlane.xlu0 %1507
        %v1509 = vmul.f32 %v1508, %v1502
        %v1510 = vadd.f32 %v1509, 1e-05
        %v1511 = vrsqrt.pop %v1510
        %v1512 = vmul.f32 %v1504, %v1511
        %v1513 = vld [vmem:[%s11] sm:$0x1]
        %v1515 = vlaneseq
        %v1516 = vshrl.u32 %v1515, 7
        %v1517 = vsub.s32 0, %v1516
        %v1518 = vrot.slane %v1513, %v1517
        %v1520 = vmul.f32 %v1512, %v1518
        %v1521 = vld [vmem:[%s12] sm:$0x1]
        %v1523 = vlaneseq
        %v1524 = vshrl.u32 %v1523, 7
        %v1525 = vsub.s32 0, %v1524
        %v1526 = vrot.slane %v1521, %v1525
        %v1528 = vadd.f32 %v1520, %v1526
        %1529 = vst.msk [vmem:[%s633] sm:$0xff] %vm669, %v1498
        %1530 = vst.msk [vmem:[%s626] sm:$0xff] %vm669, %v1528
        %s1531 = sand.u32 %s337, 1
        %s1532 = scalar_lea.sflag [#allocation4], %s1531
        %s1533 = sand.u32 %s337, 1
        %s1534 = smul.addr %s1533, 8
        %s1535 = scalar_lea.vmem [#allocation13], %s1534
        %s1536 = sand.u32 %s41, 1
        %s1537 = scalar_lea.sflag [#allocation15], %s1536
        %s1538 = sand.u32 %s363, 1
        %s1539 = smul.addr %s1538, 8
        %s1540 = scalar_lea.vmem [#allocation14], %s1539
        %s1541 = sand.u32 %s41, 1
        %s1542 = scalar_lea.sflag [#allocation15], %s1541
        %s1543 = sand.u32 %s389, 1
        %s1544 = smul.addr %s1543, 32
        %s1545 = scalar_lea.vmem [#allocation16], %s1544
        // Predicated region
        $region97: #{tpu_custom_call.1} parent=71 // pred_check
          %p1546 = pneg %p347
        $region98: #{tpu_custom_call.1} parent=71 // pred_check_branch
          %1548 = sbr.rel (%p1546) target = $region100
        $region99: #{tpu_custom_call.1} parent=71 // pred_region
          %s1550 = ssub.s32 128, 128
          %1551 = vsyncadd %s1532, %s1550
          %s1552 = smul.addr %s41, 128
          %s1553 = scalar_lea.hbm %s13, %s1552
          %s1555 = sshll.u32 %s1535, 4
          %s1556 = int_to_ptr.vmem [resolvable:$true] %s1555
          %1558 = dma.vmem_to_hbm [thread:$0]  %s1556, 128, %s1553, %s1532
        $region100: #{tpu_custom_call.1} parent=71 // pred_fallthru
          _
        // Predicated region
        $region101: #{tpu_custom_call.1} parent=71 // pred_check
          %p1559 = pneg %p373
        $region102: #{tpu_custom_call.1} parent=71 // pred_check_branch
          %1561 = sbr.rel (%p1559) target = $region104
        $region103: #{tpu_custom_call.1} parent=71 // pred_region
          %s1563 = ssub.s32 128, 128
          %1564 = vsyncadd %s1537, %s1563
          %s1565 = smul.addr %s41, 128
          %s1566 = scalar_lea.hbm %s14, %s1565
          %s1568 = sshll.u32 %s1540, 4
          %s1569 = int_to_ptr.vmem [resolvable:$true] %s1568
          %1571 = dma.vmem_to_hbm [thread:$0]  %s1569, 128, %s1566, %s1537
        $region104: #{tpu_custom_call.1} parent=71 // pred_fallthru
          _
        // Predicated region
        $region105: #{tpu_custom_call.1} parent=71 // pred_check
          %p1572 = pneg %p399
        $region106: #{tpu_custom_call.1} parent=71 // pred_check_branch
          %1574 = sbr.rel (%p1572) target = $region108
        $region107: #{tpu_custom_call.1} parent=71 // pred_region
          %s1576 = ssub.s32 512, 512
          %1577 = vsyncadd %s1542, %s1576
          %s1578 = smul.addr %s41, 4
          %s1579 = smul.addr %s1578, 128
          %s1580 = scalar_lea.hbm %s15, %s1579
          %s1581 = sshll.u32 %s1545, 4
          %s1582 = int_to_ptr.vmem [resolvable:$true] %s1581
          %1587 = dma.vmem_to_hbm [thread:$0]  %s1582, 512, %s1580, %s1542, 128, 128, 8
        $region108: #{tpu_custom_call.1} parent=71 // pred_fallthru
          _
      $region72: #{tpu_custom_call.1} parent=5 // pred_fallthru
        _
      %p1588 = scmp.le.s32.totalorder 2, %s36
      // Predicated region
      $region109: #{tpu_custom_call.1} parent=5 // pred_check
        %p1589 = pneg %p1588
      $region110: #{tpu_custom_call.1} parent=5 // pred_check_branch
        %1591 = sbr.rel (%p1589) target = $region112
      $region111: #{tpu_custom_call.1} parent=5 // pred_region
        %s1592 = ssub.s32 %s36, 2
        // Predicated region
        $region113: #{tpu_custom_call.1} parent=111 // pred_check
          %p1593 = pneg %p353
        $region114: #{tpu_custom_call.1} parent=111 // pred_check_branch
          %1595 = sbr.rel (%p1593) target = $region116
        $region115: #{tpu_custom_call.1} parent=111 // pred_region
          %s1596 = sand.u32 %s338, 1
          %s1597 = scalar_lea.sflag [#allocation4], %s1596
          %s1598 = sand.u32 %s338, 1
          %s1599 = smul.addr %s1598, 8
          %s1600 = scalar_lea.vmem [#allocation13], %s1599
          %1601 = dma.done %s1597, 128
        $region116: #{tpu_custom_call.1} parent=111 // pred_fallthru
          _
        // Predicated region
        $region117: #{tpu_custom_call.1} parent=111 // pred_check
          %p1602 = pneg %p379
        $region118: #{tpu_custom_call.1} parent=111 // pred_check_branch
          %1604 = sbr.rel (%p1602) target = $region120
        $region119: #{tpu_custom_call.1} parent=111 // pred_region
          %s1605 = sand.u32 %s42, 1
          %s1606 = scalar_lea.sflag [#allocation15], %s1605
          %s1607 = sand.u32 %s364, 1
          %s1608 = smul.addr %s1607, 8
          %s1609 = scalar_lea.vmem [#allocation14], %s1608
          %1610 = dma.done %s1606, 128
        $region120: #{tpu_custom_call.1} parent=111 // pred_fallthru
          _
        // Predicated region
        $region121: #{tpu_custom_call.1} parent=111 // pred_check
          %p1611 = pneg %p405
        $region122: #{tpu_custom_call.1} parent=111 // pred_check_branch
          %1613 = sbr.rel (%p1611) target = $region124
        $region123: #{tpu_custom_call.1} parent=111 // pred_region
          %s1614 = sand.u32 %s42, 1
          %s1615 = scalar_lea.sflag [#allocation15], %s1614
          %s1616 = sand.u32 %s390, 1
          %s1617 = smul.addr %s1616, 32
          %s1618 = scalar_lea.vmem [#allocation16], %s1617
          %1619 = dma.done %s1615, 512
        $region124: #{tpu_custom_call.1} parent=111 // pred_fallthru
          _
      $region112: #{tpu_custom_call.1} parent=5 // pred_fallthru
        _
    $region6: #{tpu_custom_call.1} parent=1 // loop_footer
      %s40 = sadd.s32 1, %s36
    $region7: #{tpu_custom_call.1} parent=1 // loop_footer_branch
      %35 = sbr.rel target = $region3
    $region8: #{tpu_custom_call.1} parent=1 // loop_exit
      _
    %1620 = vsyncpa [#allocation3], 1
    %s1621 = scalar_lea.sflag [#allocation3], 1
    %1622 = vsyncpa %s1621, 1
    %1623 = vsyncpa [#allocation6], 1
    %s1624 = scalar_lea.sflag [#allocation6], 1
    %1625 = vsyncpa %s1624, 1
    %1626 = vsyncpa [#allocation9], 1
    %1627 = vsyncpa [#allocation12], 1
    %1628 = vsyncpa [#allocation4], 1
    %s1629 = scalar_lea.sflag [#allocation4], 1
    %1630 = vsyncpa %s1629, 1
    %1631 = vsyncpa [#allocation15], 1
    %s1632 = scalar_lea.sflag [#allocation15], 1
    %1633 = vsyncpa %s1632, 1

</llo_original>
